<compile_context>
chip_gen: v5e
topology: v5e:2x2
jax: 0.10.0
libtpu: 0.0.40
codegen_flags: <defaults>
</compile_context>

<pallas_src>
import functools

import jax
import jax.numpy as jnp
from jax.experimental import pallas as pl
from jax.experimental.pallas import tpu as pltpu


def _round_up(x, m):
    return ((x + m - 1) // m) * m


def _wide_deep_kernel(n_emb, vocab_sizes, n_hidden, *refs):
    """refs = (xw_t, xd_t, emb_t*..., [w_t, b_t]*n_hidden, wfc_wide, wfc_deep,
               bfc_smem, out)   -- all feature-major, batch on lanes."""
    xw_ref, xd_ref = refs[0], refs[1]
    out_ref = refs[-1]
    tb = xw_ref.shape[1]

    hi = jax.lax.Precision.HIGHEST

    # ---- fused embedding lookup as one-hot matmuls (keeps deep_in off HBM) ----
    xd = xd_ref[...]                                    # (n_emb, TB) int32
    embs = []
    idx = 2
    for e in range(n_emb):
        vocab = vocab_sizes[e]
        tbl_t = refs[idx][...]                          # (edim, vocab)
        idx += 1
        ids = xd[e:e + 1, :]                            # (1, TB)
        onehot = (
            jax.lax.broadcasted_iota(jnp.int32, (vocab, tb), 0) == ids
        ).astype(jnp.float32)                           # (vocab, TB)
        embs.append(
            jnp.dot(tbl_t, onehot,
                    preferred_element_type=jnp.float32, precision=hi)
        )                                               # (edim, TB)
    h = jnp.concatenate(embs, axis=0)                   # (deep_dim, TB)

    # ---- deep MLP: relu(W^T @ h + b) with batch on the lane axis ----
    for _ in range(n_hidden):
        w_t = refs[idx][...]                            # (out, in)
        b_t = refs[idx + 1][...]                        # (out, 1)
        idx += 2
        h = jnp.maximum(
            jnp.dot(w_t, h, preferred_element_type=jnp.float32, precision=hi)
            + b_t,
            0.0,
        )

    # ---- final fc over cat([X_w, deep]) in split form, VPU mul + XLU reduce ----
    wfc_wide = refs[idx][...]                           # (wide_dim, 1)
    wfc_deep = refs[idx + 1][...]                       # (h_last, 1)
    bfc_ref = refs[idx + 2]                             # SMEM (1, 1)

    out_ref[...] = (
        jnp.sum(xw_ref[...] * wfc_wide, axis=0, keepdims=True)
        + jnp.sum(h * wfc_deep, axis=0, keepdims=True)
        + bfc_ref[0, 0]
    )                                                   # (1, TB) lane-dense


def wide_and_deep_forward(x_w, x_d, params, *, tb=512):
    """Forward pass matching WideAndDeep.forward (eval mode).

    x_w: (B, wide_dim) float32
    x_d: (B, n_emb)    int32 category indices
    """
    emb_tables = params["emb_tables"]          # list of (vocab, embed_dim)
    hidden = params["hidden"]                  # list of (W (in,out), b (1,out))
    wfc = params["fc_w"]                       # (wide_dim + hidden[-1], 1)
    bfc = params["fc_b"]                       # (1, 1)

    B, wide_dim = x_w.shape
    n_emb = len(emb_tables)
    n_hidden = len(hidden)
    vocab_sizes = tuple(int(t.shape[0]) for t in emb_tables)

    # Batch tile: multiple of 128 (lane width); pad B up to a multiple of TB.
    TB = min(int(tb), _round_up(B, 128))
    B_pad = _round_up(B, TB)
    grid = (B_pad // TB,)

    # Feature-major (batch-on-lanes) inputs; padded batch columns use index 0.
    x_w_t = jnp.pad(x_w.astype(jnp.float32).T, ((0, 0), (0, B_pad - B)))
    x_d_t = jnp.pad(x_d.astype(jnp.int32).T, ((0, 0), (0, B_pad - B)))

    args = [x_w_t, x_d_t]
    specs = [
        pl.BlockSpec((wide_dim, TB), lambda i: (0, i)),
        pl.BlockSpec((n_emb, TB), lambda i: (0, i)),
    ]
    for tbl in emb_tables:
        tbl_t = tbl.astype(jnp.float32).T               # (edim, vocab)
        args.append(tbl_t)
        specs.append(pl.BlockSpec(tbl_t.shape, lambda i: (0, 0)))
    for (w, b) in hidden:
        w_t = w.astype(jnp.float32).T                   # (out, in)
        b_t = b.astype(jnp.float32).reshape(-1, 1)      # (out, 1)
        args += [w_t, b_t]
        specs.append(pl.BlockSpec(w_t.shape, lambda i: (0, 0)))
        specs.append(pl.BlockSpec(b_t.shape, lambda i: (0, 0)))
    wfc_wide = wfc[:wide_dim, :].astype(jnp.float32)    # (wide_dim, 1)
    wfc_deep = wfc[wide_dim:, :].astype(jnp.float32)    # (h_last, 1)
    args += [wfc_wide, wfc_deep, bfc.astype(jnp.float32).reshape(1, 1)]
    specs.append(pl.BlockSpec(wfc_wide.shape, lambda i: (0, 0)))
    specs.append(pl.BlockSpec(wfc_deep.shape, lambda i: (0, 0)))
    specs.append(
        pl.BlockSpec((1, 1), lambda i: (0, 0),
                     memory_space=pltpu.MemorySpace.SMEM)
    )

    out_t = pl.pallas_call(
        functools.partial(_wide_deep_kernel, n_emb, vocab_sizes, n_hidden),
        out_shape=jax.ShapeDtypeStruct((1, B_pad), jnp.float32),
        grid=grid,
        in_specs=specs,
        out_specs=pl.BlockSpec((1, TB), lambda i: (0, i)),
        compiler_params=pltpu.CompilerParams(
            dimension_semantics=("parallel",)),
    )(*args)

    return out_t[0, :B].reshape(B, 1)


def _reference_forward(x_w, x_d, params):
    """Pure-JAX reference (PyTorch semantics, eval mode)."""
    hi = jax.lax.Precision.HIGHEST
    embeddings = [
        jnp.take(tbl, x_d[:, i], axis=0)
        for i, tbl in enumerate(params["emb_tables"])
    ]
    deep_out = jnp.concatenate(embeddings, axis=-1)
    for (w, b) in params["hidden"]:
        deep_out = jax.nn.relu(jnp.dot(deep_out, w, precision=hi) + b)
    fc_in = jnp.concatenate([x_w, deep_out], axis=-1)
    return jnp.dot(fc_in, params["fc_w"], precision=hi) + params["fc_b"]


def init_params(key, wide_dim, embedding_specs, hidden_layers):
    """embedding_specs: list of (vocab_size, embed_dim)."""
    keys = jax.random.split(
        key, 2 * len(embedding_specs) + 2 * len(hidden_layers) + 2)
    ki = iter(range(len(keys)))

    emb_tables = []
    deep_dim = 0
    for (vocab, edim) in embedding_specs:
        emb_tables.append(
            jax.random.normal(keys[next(ki)], (vocab, edim), jnp.float32) * 0.1)
        deep_dim += edim

    hidden = []
    in_dim = deep_dim
    for h in hidden_layers:
        w = jax.random.normal(keys[next(ki)], (in_dim, h), jnp.float32) \
            * (1.0 / jnp.sqrt(in_dim))
        b = jax.random.normal(keys[next(ki)], (1, h), jnp.float32) * 0.01
        hidden.append((w, b))
        in_dim = h

    fc_in = wide_dim + hidden_layers[-1]
    fc_w = jax.random.normal(keys[next(ki)], (fc_in, 1), jnp.float32) \
        * (1.0 / jnp.sqrt(fc_in))
    fc_b = jax.random.normal(keys[next(ki)], (1, 1), jnp.float32) * 0.01

    return {"emb_tables": emb_tables, "hidden": hidden,
            "fc_w": fc_w, "fc_b": fc_b}


if __name__ == "__main__":
    # Module config: embedding_inputs = ["userSEP100SEP16", "itemSEP50SEP16"],
    # hidden_layers = [32, 16], wide_dim = 8.
    wide_dim = 8
    embedding_specs = [(100, 16), (50, 16)]   # (vocab_size, embed_dim)
    hidden_layers = [32, 16]
    B = 200                                   # small; tb=128 -> grid of 2 + padding

    key = jax.random.PRNGKey(0)
    k_params, k_xw, k_xd = jax.random.split(key, 3)

    params = init_params(k_params, wide_dim, embedding_specs, hidden_layers)

    x_w = jax.random.normal(k_xw, (B, wide_dim), jnp.float32)
    x_d = jnp.stack(
        [
            jax.random.randint(jax.random.fold_in(k_xd, i), (B,), 0, vocab,
                               jnp.int32)
            for i, (vocab, _) in enumerate(embedding_specs)
        ],
        axis=1,
    )

    fwd = jax.jit(functools.partial(wide_and_deep_forward, tb=128))
    out = jax.block_until_ready(fwd(x_w, x_d, params))

    ref = _reference_forward(x_w, x_d, params)
    assert out.shape == (B, 1)
    assert jnp.allclose(out, ref, atol=1e-4, rtol=1e-4), \
        float(jnp.max(jnp.abs(out - ref)))

    print("KERNEL_OK")
</pallas_src>

<mosaic_0001>
module attributes {stable_mosaic.version = 11 : i64} {
  func.func @_wide_deep_kernel(%arg0: i32, %arg1: memref<8x128xf32, #tpu.memory_space<vmem>>, %arg2: memref<2x128xi32, #tpu.memory_space<vmem>>, %arg3: memref<16x100xf32, #tpu.memory_space<vmem>>, %arg4: memref<16x50xf32, #tpu.memory_space<vmem>>, %arg5: memref<32x32xf32, #tpu.memory_space<vmem>>, %arg6: memref<32x1xf32, #tpu.memory_space<vmem>>, %arg7: memref<16x32xf32, #tpu.memory_space<vmem>>, %arg8: memref<16x1xf32, #tpu.memory_space<vmem>>, %arg9: memref<8x1xf32, #tpu.memory_space<vmem>>, %arg10: memref<16x1xf32, #tpu.memory_space<vmem>>, %arg11: memref<1x1xf32, #tpu.memory_space<smem>>, %arg12: memref<1x128xf32, #tpu.memory_space<vmem>>) attributes {dimension_semantics = [#tpu.dimension_semantics<parallel>], iteration_bounds = array<i64: 2>, scalar_prefetch = 0 : i64, scratch_operands = 0 : i64, tpu.core_type = #tpu.core_type<tc>, window_params = [{transform_indices = @transform_0, window_bounds = array<i64: 8, 128>}, {transform_indices = @transform_1, window_bounds = array<i64: 2, 128>}, {pipeline_mode = #tpu.pipeline_mode<synchronous>, transform_indices = @transform_2, window_bounds = array<i64: 16, 100>}, {pipeline_mode = #tpu.pipeline_mode<synchronous>, transform_indices = @transform_3, window_bounds = array<i64: 16, 50>}, {pipeline_mode = #tpu.pipeline_mode<synchronous>, transform_indices = @transform_4, window_bounds = array<i64: 32, 32>}, {pipeline_mode = #tpu.pipeline_mode<synchronous>, transform_indices = @transform_5, window_bounds = array<i64: 32, 1>}, {pipeline_mode = #tpu.pipeline_mode<synchronous>, transform_indices = @transform_6, window_bounds = array<i64: 16, 32>}, {pipeline_mode = #tpu.pipeline_mode<synchronous>, transform_indices = @transform_7, window_bounds = array<i64: 16, 1>}, {pipeline_mode = #tpu.pipeline_mode<synchronous>, transform_indices = @transform_8, window_bounds = array<i64: 8, 1>}, {pipeline_mode = #tpu.pipeline_mode<synchronous>, transform_indices = @transform_9, window_bounds = array<i64: 16, 1>}, {transform_indices = @transform_10, window_bounds = array<i64: 1, 1>}, {transform_indices = @transform_11, window_bounds = array<i64: 1, 128>}]} {
    %c0 = arith.constant 0 : index
    %c0_0 = arith.constant 0 : index
    %0 = vector.load %arg2[%c0, %c0_0] : memref<2x128xi32, #tpu.memory_space<vmem>>, vector<2x128xi32>
    %c0_1 = arith.constant 0 : index
    %c0_2 = arith.constant 0 : index
    %1 = vector.load %arg3[%c0_1, %c0_2] : memref<16x100xf32, #tpu.memory_space<vmem>>, vector<16x100xf32>
    %2 = vector.extract_strided_slice %0 {offsets = [0, 0], sizes = [1, 128], strides = [1, 1]} : vector<2x128xi32> to vector<1x128xi32>
    %3 = tpu.iota {dimensions = array<i32: 0>} : vector<100x128xi32>
    %4 = vector.broadcast %2 : vector<1x128xi32> to vector<100x128xi32>
    %5 = arith.cmpi eq, %3, %4 : vector<100x128xi32>
    %6 = arith.extui %5 : vector<100x128xi1> to vector<100x128xi32>
    %7 = arith.sitofp %6 : vector<100x128xi32> to vector<100x128xf32>
    %cst = arith.constant dense<0.000000e+00> : vector<16x128xf32>
    %8 = tpu.matmul %1, %7, %cst {dimension_numbers = #tpu.dot_dimension_numbers<[1], [0], [0], [1], [0, 0, 1, 1], [], []>, precision = #tpu.contract_precision<fp32>} : vector<16x100xf32>, vector<100x128xf32>, vector<16x128xf32> -> vector<16x128xf32>
    %c0_3 = arith.constant 0 : index
    %c0_4 = arith.constant 0 : index
    %9 = vector.load %arg4[%c0_3, %c0_4] : memref<16x50xf32, #tpu.memory_space<vmem>>, vector<16x50xf32>
    %10 = vector.extract_strided_slice %0 {offsets = [1, 0], sizes = [1, 128], strides = [1, 1]} : vector<2x128xi32> to vector<1x128xi32>
    %11 = tpu.iota {dimensions = array<i32: 0>} : vector<50x128xi32>
    %12 = vector.broadcast %10 : vector<1x128xi32> to vector<50x128xi32>
    %13 = arith.cmpi eq, %11, %12 : vector<50x128xi32>
    %14 = arith.extui %13 : vector<50x128xi1> to vector<50x128xi32>
    %15 = arith.sitofp %14 : vector<50x128xi32> to vector<50x128xf32>
    %cst_5 = arith.constant dense<0.000000e+00> : vector<16x128xf32>
    %16 = tpu.matmul %9, %15, %cst_5 {dimension_numbers = #tpu.dot_dimension_numbers<[1], [0], [0], [1], [0, 0, 1, 1], [], []>, precision = #tpu.contract_precision<fp32>} : vector<16x50xf32>, vector<50x128xf32>, vector<16x128xf32> -> vector<16x128xf32>
    %17 = tpu.concatenate %8, %16 in 0 : vector<16x128xf32>, vector<16x128xf32> -> vector<32x128xf32>
    %c0_6 = arith.constant 0 : index
    %c0_7 = arith.constant 0 : index
    %18 = vector.load %arg5[%c0_6, %c0_7] : memref<32x32xf32, #tpu.memory_space<vmem>>, vector<32x32xf32>
    %c0_8 = arith.constant 0 : index
    %c0_9 = arith.constant 0 : index
    %19 = vector.load %arg6[%c0_8, %c0_9] : memref<32x1xf32, #tpu.memory_space<vmem>>, vector<32x1xf32>
    %cst_10 = arith.constant dense<0.000000e+00> : vector<32x128xf32>
    %20 = tpu.matmul %18, %17, %cst_10 {dimension_numbers = #tpu.dot_dimension_numbers<[1], [0], [0], [1], [0, 0, 1, 1], [], []>, precision = #tpu.contract_precision<fp32>} : vector<32x32xf32>, vector<32x128xf32>, vector<32x128xf32> -> vector<32x128xf32>
    %21 = vector.broadcast %19 : vector<32x1xf32> to vector<32x128xf32>
    %22 = arith.addf %20, %21 : vector<32x128xf32>
    %cst_11 = arith.constant 0.000000e+00 : f32
    %23 = vector.broadcast %cst_11 : f32 to vector<32x128xf32>
    %24 = arith.maximumf %22, %23 : vector<32x128xf32>
    %c0_12 = arith.constant 0 : index
    %c0_13 = arith.constant 0 : index
    %25 = vector.load %arg7[%c0_12, %c0_13] : memref<16x32xf32, #tpu.memory_space<vmem>>, vector<16x32xf32>
    %c0_14 = arith.constant 0 : index
    %c0_15 = arith.constant 0 : index
    %26 = vector.load %arg8[%c0_14, %c0_15] : memref<16x1xf32, #tpu.memory_space<vmem>>, vector<16x1xf32>
    %cst_16 = arith.constant dense<0.000000e+00> : vector<16x128xf32>
    %27 = tpu.matmul %25, %24, %cst_16 {dimension_numbers = #tpu.dot_dimension_numbers<[1], [0], [0], [1], [0, 0, 1, 1], [], []>, precision = #tpu.contract_precision<fp32>} : vector<16x32xf32>, vector<32x128xf32>, vector<16x128xf32> -> vector<16x128xf32>
    %28 = vector.broadcast %26 : vector<16x1xf32> to vector<16x128xf32>
    %29 = arith.addf %27, %28 : vector<16x128xf32>
    %cst_17 = arith.constant 0.000000e+00 : f32
    %30 = vector.broadcast %cst_17 : f32 to vector<16x128xf32>
    %31 = arith.maximumf %29, %30 : vector<16x128xf32>
    %c0_18 = arith.constant 0 : index
    %c0_19 = arith.constant 0 : index
    %32 = vector.load %arg9[%c0_18, %c0_19] : memref<8x1xf32, #tpu.memory_space<vmem>>, vector<8x1xf32>
    %c0_20 = arith.constant 0 : index
    %c0_21 = arith.constant 0 : index
    %33 = vector.load %arg10[%c0_20, %c0_21] : memref<16x1xf32, #tpu.memory_space<vmem>>, vector<16x1xf32>
    %c0_22 = arith.constant 0 : index
    %c0_23 = arith.constant 0 : index
    %34 = vector.load %arg1[%c0_22, %c0_23] : memref<8x128xf32, #tpu.memory_space<vmem>>, vector<8x128xf32>
    %35 = vector.broadcast %32 : vector<8x1xf32> to vector<8x128xf32>
    %36 = arith.mulf %34, %35 : vector<8x128xf32>
    %cst_24 = arith.constant dense<0.000000e+00> : vector<128xf32>
    %37 = vector.multi_reduction <add>, %36, %cst_24 [0] : vector<8x128xf32> to vector<128xf32>
    %38 = vector.shape_cast %37 : vector<128xf32> to vector<1x128xf32>
    %39 = vector.broadcast %33 : vector<16x1xf32> to vector<16x128xf32>
    %40 = arith.mulf %31, %39 : vector<16x128xf32>
    %cst_25 = arith.constant dense<0.000000e+00> : vector<128xf32>
    %41 = vector.multi_reduction <add>, %40, %cst_25 [0] : vector<16x128xf32> to vector<128xf32>
    %42 = vector.shape_cast %41 : vector<128xf32> to vector<1x128xf32>
    %43 = arith.addf %38, %42 : vector<1x128xf32>
    %c0_26 = arith.constant 0 : index
    %c0_27 = arith.constant 0 : index
    %44 = memref.load %arg11[%c0_26, %c0_27] : memref<1x1xf32, #tpu.memory_space<smem>>
    %45 = vector.broadcast %44 : f32 to vector<1x128xf32>
    %46 = arith.addf %43, %45 : vector<1x128xf32>
    %c0_28 = arith.constant 0 : index
    %c0_29 = arith.constant 0 : index
    %47 = vector.load %arg12[%c0_28, %c0_29] : memref<1x128xf32, #tpu.memory_space<vmem>>, vector<1x128xf32>
    tpu.vector_store %arg12[%c0_28, %c0_29], %46 {strides = array<i32>} : memref<1x128xf32, #tpu.memory_space<vmem>>, vector<1x128xf32>,
    return
  }
  func.func @transform_0(%arg0: i32) -> (i32, i32) {
    %c0_i32 = arith.constant 0 : i32
    %c0_i32_0 = arith.constant 0 : i32
    return %c0_i32, %arg0 : i32, i32
  }
  func.func @transform_1(%arg0: i32) -> (i32, i32) {
    %c0_i32 = arith.constant 0 : i32
    %c0_i32_0 = arith.constant 0 : i32
    return %c0_i32, %arg0 : i32, i32
  }
  func.func @transform_2(%arg0: i32) -> (i32, i32) {
    %c0_i32 = arith.constant 0 : i32
    %c0_i32_0 = arith.constant 0 : i32
    %c0_i32_1 = arith.constant 0 : i32
    return %c0_i32, %c0_i32_0 : i32, i32
  }
  func.func @transform_3(%arg0: i32) -> (i32, i32) {
    %c0_i32 = arith.constant 0 : i32
    %c0_i32_0 = arith.constant 0 : i32
    %c0_i32_1 = arith.constant 0 : i32
    return %c0_i32, %c0_i32_0 : i32, i32
  }
  func.func @transform_4(%arg0: i32) -> (i32, i32) {
    %c0_i32 = arith.constant 0 : i32
    %c0_i32_0 = arith.constant 0 : i32
    %c0_i32_1 = arith.constant 0 : i32
    return %c0_i32, %c0_i32_0 : i32, i32
  }
  func.func @transform_5(%arg0: i32) -> (i32, i32) {
    %c0_i32 = arith.constant 0 : i32
    %c0_i32_0 = arith.constant 0 : i32
    %c0_i32_1 = arith.constant 0 : i32
    return %c0_i32, %c0_i32_0 : i32, i32
  }
  func.func @transform_6(%arg0: i32) -> (i32, i32) {
    %c0_i32 = arith.constant 0 : i32
    %c0_i32_0 = arith.constant 0 : i32
    %c0_i32_1 = arith.constant 0 : i32
    return %c0_i32, %c0_i32_0 : i32, i32
  }
  func.func @transform_7(%arg0: i32) -> (i32, i32) {
    %c0_i32 = arith.constant 0 : i32
    %c0_i32_0 = arith.constant 0 : i32
    %c0_i32_1 = arith.constant 0 : i32
    return %c0_i32, %c0_i32_0 : i32, i32
  }
  func.func @transform_8(%arg0: i32) -> (i32, i32) {
    %c0_i32 = arith.constant 0 : i32
    %c0_i32_0 = arith.constant 0 : i32
    %c0_i32_1 = arith.constant 0 : i32
    return %c0_i32, %c0_i32_0 : i32, i32
  }
  func.func @transform_9(%arg0: i32) -> (i32, i32) {
    %c0_i32 = arith.constant 0 : i32
    %c0_i32_0 = arith.constant 0 : i32
    %c0_i32_1 = arith.constant 0 : i32
    return %c0_i32, %c0_i32_0 : i32, i32
  }
  func.func @transform_10(%arg0: i32) -> (i32, i32) {
    %c0_i32 = arith.constant 0 : i32
    %c0_i32_0 = arith.constant 0 : i32
    %c0_i32_1 = arith.constant 0 : i32
    return %c0_i32, %c0_i32_0 : i32, i32
  }
  func.func @transform_11(%arg0: i32) -> (i32, i32) {
    %c0_i32 = arith.constant 0 : i32
    %c0_i32_0 = arith.constant 0 : i32
    return %c0_i32, %arg0 : i32, i32
  }
}

</mosaic_0001>

<llo_original>
// kernel: wide_and_deep_forward.1
$region0: #{wide_and_deep_forward.1}
  #allocation0 [shape = 'u32[]', space=smem, size = 0x4, offset = 0x4, fixed_abs, tag = 'smem constant byte address 0x4 - core index']
  #allocation1 [shape = 'u32[72,128]{1,0:T(1,128)}', space=vmem, size = 0x9000, scoped, tag = 'internal scratch']
  #allocation2 [shape = 'f32[1,1]{1,0:T(1,128)S(6)}', space=smem, size = 0x200, scoped, tag = 'scoped memory for wide_and_deep_forward.1']
  %s0 = inlined_call_operand.vmem [shape: f32[8,256], index: 0, kind: input, shape index: {}]
  %s1 = inlined_call_operand.vmem [shape: s32[2,256], index: 1, kind: input, shape index: {}]
  %s2 = inlined_call_operand.vmem [shape: f32[16,100], index: 2, kind: input, shape index: {}]
  %s3 = inlined_call_operand.vmem [shape: f32[16,50], index: 3, kind: input, shape index: {}]
  %s4 = inlined_call_operand.vmem [shape: f32[32,32], index: 4, kind: input, shape index: {}]
  %s5 = inlined_call_operand.vmem [shape: f32[32,1], index: 5, kind: input, shape index: {}]
  %s6 = inlined_call_operand.vmem [shape: f32[16,32], index: 6, kind: input, shape index: {}]
  %s7 = inlined_call_operand.vmem [shape: f32[16,1], index: 7, kind: input, shape index: {}]
  %s8 = inlined_call_operand.vmem [shape: f32[8,1], index: 8, kind: input, shape index: {}]
  %s9 = inlined_call_operand.vmem [shape: f32[16,1], index: 9, kind: input, shape index: {}]
  %s10 = inlined_call_operand.<no memory space> [shape: f32[1,1], index: 10, kind: input, shape index: {}]
  %s11 = inlined_call_operand.vmem [shape: f32[1,256], index: 11, kind: output, shape index: {}]
  %s12 = sld [smem:[#allocation0]]
  $region77: #{wide_and_deep_forward.1} parent=0
    _
  %s14 = ssub.s32 1, %s12
  %s15 = scalar_select 0, %s14, %s12
  %16 = sst [smem:[#allocation2]] %s10
  loop: start=0, step=1, limit=4
  $region2: #{wide_and_deep_forward.1} parent=0 // loop_pre_header
    _
  $region3: #{wide_and_deep_forward.1} parent=0 // loop_header
    %s18 = sphi 0, %s22
    %p19 = scmp.ge.s32.totalorder %s18, 4
    %s28 = sphi 0, %s30
    %s31 = sphi 0, %s28
    %s32 = sphi 0, %s31
    %s48 = sphi 0, %s32
    %s54 = sphi 0, %s56
    %s57 = sphi 0, %s54
    %s58 = sphi 0, %s57
    %s74 = sphi 0, %s58
    %s78 = sphi 0, %s78
    %s80 = sphi 0, %s78
    %s81 = sphi 0, %s80
    %s95 = sphi 0, %s81
    %s99 = sphi 0, %s99
    %s101 = sphi 0, %s99
    %s102 = sphi 0, %s101
    %s116 = sphi 0, %s102
    %s120 = sphi 0, %s120
    %s122 = sphi 0, %s120
    %s123 = sphi 0, %s122
    %s137 = sphi 0, %s123
    %s141 = sphi 0, %s141
    %s143 = sphi 0, %s141
    %s144 = sphi 0, %s143
    %s158 = sphi 0, %s144
    %s162 = sphi 0, %s162
    %s164 = sphi 0, %s162
    %s165 = sphi 0, %s164
    %s179 = sphi 0, %s165
    %s183 = sphi 0, %s183
    %s185 = sphi 0, %s183
    %s186 = sphi 0, %s185
    %s200 = sphi 0, %s186
    %s204 = sphi 0, %s204
    %s206 = sphi 0, %s204
    %s207 = sphi 0, %s206
    %s221 = sphi 0, %s207
    %s225 = sphi 0, %s225
    %s227 = sphi 0, %s225
    %s228 = sphi 0, %s227
    %s242 = sphi 0, %s228
    %s246 = sphi 0, %s246
    %s248 = sphi 0, %s246
    %s249 = sphi 0, %s248
    %s263 = sphi 0, %s249
    %s269 = sphi 0, %s271
    %s272 = sphi 0, %s269
    %s273 = sphi 0, %s272
    %s289 = sphi 0, %s273
  $region4: #{wide_and_deep_forward.1} parent=0 // loop_header_branch
    %21 = sbr.rel (%p19) target = $region8
  $region5: #{wide_and_deep_forward.1} parent=0 // loop_body
    %s23 = ssub.s32 %s18, 1
    %s24 = ssub.s32 %s18, 2
    %s25 = sadd.s32 %s18, 1
    %s26 = ssub.s32 %s18, %s25
    %p27 = scmp.eq.s32.totalorder %s26, 0
    %s29 = sadd.s32 %s28, 1
    %s30 = scalar_select %p27, %s28, %s29
    %p33 = pneg %p27
    %p34 = scmp.eq.s32.totalorder %s18, 1
    %p35 = por %p33, %p34
    %p36 = scmp.ne.s32.totalorder %s28, %s31
    %p37 = scmp.eq.s32.totalorder %s18, 0
    %p38 = por %p36, %p37
    %p39 = scmp.ne.s32.totalorder %s28, %s31
    %p40 = scmp.eq.s32.totalorder %s23, 1
    %p41 = por %p39, %p40
    %p42 = scmp.ne.s32.totalorder %s31, %s32
    %p43 = scmp.eq.s32.totalorder %s23, 0
    %p44 = por %p42, %p43
    %p45 = scmp.ne.s32.totalorder %s31, %s32
    %p46 = scmp.eq.s32.totalorder %s24, 1
    %p47 = por %p45, %p46
    %p49 = scmp.ne.s32.totalorder %s32, %s48
    %p50 = scmp.eq.s32.totalorder %s24, 0
    %p51 = por %p49, %p50
    %s52 = ssub.s32 %s18, %s25
    %p53 = scmp.eq.s32.totalorder %s52, 0
    %s55 = sadd.s32 %s54, 1
    %s56 = scalar_select %p53, %s54, %s55
    %p59 = pneg %p53
    %p60 = scmp.eq.s32.totalorder %s18, 1
    %p61 = por %p59, %p60
    %p62 = scmp.ne.s32.totalorder %s54, %s57
    %p63 = scmp.eq.s32.totalorder %s18, 0
    %p64 = por %p62, %p63
    %p65 = scmp.ne.s32.totalorder %s54, %s57
    %p66 = scmp.eq.s32.totalorder %s23, 1
    %p67 = por %p65, %p66
    %p68 = scmp.ne.s32.totalorder %s57, %s58
    %p69 = scmp.eq.s32.totalorder %s23, 0
    %p70 = por %p68, %p69
    %p71 = scmp.ne.s32.totalorder %s57, %s58
    %p72 = scmp.eq.s32.totalorder %s24, 1
    %p73 = por %p71, %p72
    %p75 = scmp.ne.s32.totalorder %s58, %s74
    %p76 = scmp.eq.s32.totalorder %s24, 0
    %p77 = por %p75, %p76
    %s79 = sadd.s32 %s78, 1
    %p82 = scmp.eq.s32.totalorder %s18, 1
    %p83 = scmp.ne.s32.totalorder %s78, %s80
    %p84 = scmp.eq.s32.totalorder %s18, 0
    %p85 = por %p83, %p84
    %p86 = scmp.ne.s32.totalorder %s78, %s80
    %p87 = scmp.eq.s32.totalorder %s23, 1
    %p88 = por %p86, %p87
    %p89 = scmp.ne.s32.totalorder %s80, %s81
    %p90 = scmp.eq.s32.totalorder %s23, 0
    %p91 = por %p89, %p90
    %p92 = scmp.ne.s32.totalorder %s80, %s81
    %p93 = scmp.eq.s32.totalorder %s24, 1
    %p94 = por %p92, %p93
    %p96 = scmp.ne.s32.totalorder %s81, %s95
    %p97 = scmp.eq.s32.totalorder %s24, 0
    %p98 = por %p96, %p97
    %s100 = sadd.s32 %s99, 1
    %p103 = scmp.eq.s32.totalorder %s18, 1
    %p104 = scmp.ne.s32.totalorder %s99, %s101
    %p105 = scmp.eq.s32.totalorder %s18, 0
    %p106 = por %p104, %p105
    %p107 = scmp.ne.s32.totalorder %s99, %s101
    %p108 = scmp.eq.s32.totalorder %s23, 1
    %p109 = por %p107, %p108
    %p110 = scmp.ne.s32.totalorder %s101, %s102
    %p111 = scmp.eq.s32.totalorder %s23, 0
    %p112 = por %p110, %p111
    %p113 = scmp.ne.s32.totalorder %s101, %s102
    %p114 = scmp.eq.s32.totalorder %s24, 1
    %p115 = por %p113, %p114
    %p117 = scmp.ne.s32.totalorder %s102, %s116
    %p118 = scmp.eq.s32.totalorder %s24, 0
    %p119 = por %p117, %p118
    %s121 = sadd.s32 %s120, 1
    %p124 = scmp.eq.s32.totalorder %s18, 1
    %p125 = scmp.ne.s32.totalorder %s120, %s122
    %p126 = scmp.eq.s32.totalorder %s18, 0
    %p127 = por %p125, %p126
    %p128 = scmp.ne.s32.totalorder %s120, %s122
    %p129 = scmp.eq.s32.totalorder %s23, 1
    %p130 = por %p128, %p129
    %p131 = scmp.ne.s32.totalorder %s122, %s123
    %p132 = scmp.eq.s32.totalorder %s23, 0
    %p133 = por %p131, %p132
    %p134 = scmp.ne.s32.totalorder %s122, %s123
    %p135 = scmp.eq.s32.totalorder %s24, 1
    %p136 = por %p134, %p135
    %p138 = scmp.ne.s32.totalorder %s123, %s137
    %p139 = scmp.eq.s32.totalorder %s24, 0
    %p140 = por %p138, %p139
    %s142 = sadd.s32 %s141, 1
    %p145 = scmp.eq.s32.totalorder %s18, 1
    %p146 = scmp.ne.s32.totalorder %s141, %s143
    %p147 = scmp.eq.s32.totalorder %s18, 0
    %p148 = por %p146, %p147
    %p149 = scmp.ne.s32.totalorder %s141, %s143
    %p150 = scmp.eq.s32.totalorder %s23, 1
    %p151 = por %p149, %p150
    %p152 = scmp.ne.s32.totalorder %s143, %s144
    %p153 = scmp.eq.s32.totalorder %s23, 0
    %p154 = por %p152, %p153
    %p155 = scmp.ne.s32.totalorder %s143, %s144
    %p156 = scmp.eq.s32.totalorder %s24, 1
    %p157 = por %p155, %p156
    %p159 = scmp.ne.s32.totalorder %s144, %s158
    %p160 = scmp.eq.s32.totalorder %s24, 0
    %p161 = por %p159, %p160
    %s163 = sadd.s32 %s162, 1
    %p166 = scmp.eq.s32.totalorder %s18, 1
    %p167 = scmp.ne.s32.totalorder %s162, %s164
    %p168 = scmp.eq.s32.totalorder %s18, 0
    %p169 = por %p167, %p168
    %p170 = scmp.ne.s32.totalorder %s162, %s164
    %p171 = scmp.eq.s32.totalorder %s23, 1
    %p172 = por %p170, %p171
    %p173 = scmp.ne.s32.totalorder %s164, %s165
    %p174 = scmp.eq.s32.totalorder %s23, 0
    %p175 = por %p173, %p174
    %p176 = scmp.ne.s32.totalorder %s164, %s165
    %p177 = scmp.eq.s32.totalorder %s24, 1
    %p178 = por %p176, %p177
    %p180 = scmp.ne.s32.totalorder %s165, %s179
    %p181 = scmp.eq.s32.totalorder %s24, 0
    %p182 = por %p180, %p181
    %s184 = sadd.s32 %s183, 1
    %p187 = scmp.eq.s32.totalorder %s18, 1
    %p188 = scmp.ne.s32.totalorder %s183, %s185
    %p189 = scmp.eq.s32.totalorder %s18, 0
    %p190 = por %p188, %p189
    %p191 = scmp.ne.s32.totalorder %s183, %s185
    %p192 = scmp.eq.s32.totalorder %s23, 1
    %p193 = por %p191, %p192
    %p194 = scmp.ne.s32.totalorder %s185, %s186
    %p195 = scmp.eq.s32.totalorder %s23, 0
    %p196 = por %p194, %p195
    %p197 = scmp.ne.s32.totalorder %s185, %s186
    %p198 = scmp.eq.s32.totalorder %s24, 1
    %p199 = por %p197, %p198
    %p201 = scmp.ne.s32.totalorder %s186, %s200
    %p202 = scmp.eq.s32.totalorder %s24, 0
    %p203 = por %p201, %p202
    %s205 = sadd.s32 %s204, 1
    %p208 = scmp.eq.s32.totalorder %s18, 1
    %p209 = scmp.ne.s32.totalorder %s204, %s206
    %p210 = scmp.eq.s32.totalorder %s18, 0
    %p211 = por %p209, %p210
    %p212 = scmp.ne.s32.totalorder %s204, %s206
    %p213 = scmp.eq.s32.totalorder %s23, 1
    %p214 = por %p212, %p213
    %p215 = scmp.ne.s32.totalorder %s206, %s207
    %p216 = scmp.eq.s32.totalorder %s23, 0
    %p217 = por %p215, %p216
    %p218 = scmp.ne.s32.totalorder %s206, %s207
    %p219 = scmp.eq.s32.totalorder %s24, 1
    %p220 = por %p218, %p219
    %p222 = scmp.ne.s32.totalorder %s207, %s221
    %p223 = scmp.eq.s32.totalorder %s24, 0
    %p224 = por %p222, %p223
    %s226 = sadd.s32 %s225, 1
    %p229 = scmp.eq.s32.totalorder %s18, 1
    %p230 = scmp.ne.s32.totalorder %s225, %s227
    %p231 = scmp.eq.s32.totalorder %s18, 0
    %p232 = por %p230, %p231
    %p233 = scmp.ne.s32.totalorder %s225, %s227
    %p234 = scmp.eq.s32.totalorder %s23, 1
    %p235 = por %p233, %p234
    %p236 = scmp.ne.s32.totalorder %s227, %s228
    %p237 = scmp.eq.s32.totalorder %s23, 0
    %p238 = por %p236, %p237
    %p239 = scmp.ne.s32.totalorder %s227, %s228
    %p240 = scmp.eq.s32.totalorder %s24, 1
    %p241 = por %p239, %p240
    %p243 = scmp.ne.s32.totalorder %s228, %s242
    %p244 = scmp.eq.s32.totalorder %s24, 0
    %p245 = por %p243, %p244
    %s247 = sadd.s32 %s246, 1
    %p250 = scmp.eq.s32.totalorder %s18, 1
    %p251 = scmp.ne.s32.totalorder %s246, %s248
    %p252 = scmp.eq.s32.totalorder %s18, 0
    %p253 = por %p251, %p252
    %p254 = scmp.ne.s32.totalorder %s246, %s248
    %p255 = scmp.eq.s32.totalorder %s23, 1
    %p256 = por %p254, %p255
    %p257 = scmp.ne.s32.totalorder %s248, %s249
    %p258 = scmp.eq.s32.totalorder %s23, 0
    %p259 = por %p257, %p258
    %p260 = scmp.ne.s32.totalorder %s248, %s249
    %p261 = scmp.eq.s32.totalorder %s24, 1
    %p262 = por %p260, %p261
    %p264 = scmp.ne.s32.totalorder %s249, %s263
    %p265 = scmp.eq.s32.totalorder %s24, 0
    %p266 = por %p264, %p265
    %s267 = ssub.s32 %s18, %s25
    %p268 = scmp.eq.s32.totalorder %s267, 0
    %s270 = sadd.s32 %s269, 1
    %s271 = scalar_select %p268, %s269, %s270
    %p274 = pneg %p268
    %p275 = scmp.eq.s32.totalorder %s18, 1
    %p276 = por %p274, %p275
    %p277 = scmp.ne.s32.totalorder %s269, %s272
    %p278 = scmp.eq.s32.totalorder %s18, 0
    %p279 = por %p277, %p278
    %p280 = scmp.ne.s32.totalorder %s269, %s272
    %p281 = scmp.eq.s32.totalorder %s23, 1
    %p282 = por %p280, %p281
    %p283 = scmp.ne.s32.totalorder %s272, %s273
    %p284 = scmp.eq.s32.totalorder %s23, 0
    %p285 = por %p283, %p284
    %p286 = scmp.ne.s32.totalorder %s272, %s273
    %p287 = scmp.eq.s32.totalorder %s24, 1
    %p288 = por %p286, %p287
    %p290 = scmp.ne.s32.totalorder %s273, %s289
    %p291 = scmp.eq.s32.totalorder %s24, 0
    %p292 = por %p290, %p291
    %p293 = scmp.le.s32.totalorder 1, %s18
    %p294 = scmp.lt.s32.totalorder %s18, 3
    %p295 = pnand %p293, %p294
    %p296 = pneg %p295
    // Predicated region
    $region9: #{wide_and_deep_forward.1} parent=5 // pred_check
      _
    $region10: #{wide_and_deep_forward.1} parent=5 // pred_check_branch
      %298 = sbr.rel (%p295) target = $region12
    $region11: #{wide_and_deep_forward.1} parent=5 // pred_region
      %s299 = ssub.s32 %s18, 1
      // Predicated region
      $region13: #{wide_and_deep_forward.1} parent=11 // pred_check
        %p300 = pneg %p91
      $region14: #{wide_and_deep_forward.1} parent=11 // pred_check_branch
        %302 = sbr.rel (%p300) target = $region16
      $region15: #{wide_and_deep_forward.1} parent=11 // pred_region
        _
      $region16: #{wide_and_deep_forward.1} parent=11 // pred_fallthru
        _
      // Predicated region
      $region17: #{wide_and_deep_forward.1} parent=11 // pred_check
        %p303 = pneg %p112
      $region18: #{wide_and_deep_forward.1} parent=11 // pred_check_branch
        %305 = sbr.rel (%p303) target = $region20
      $region19: #{wide_and_deep_forward.1} parent=11 // pred_region
        _
      $region20: #{wide_and_deep_forward.1} parent=11 // pred_fallthru
        _
      // Predicated region
      $region21: #{wide_and_deep_forward.1} parent=11 // pred_check
        %p306 = pneg %p133
      $region22: #{wide_and_deep_forward.1} parent=11 // pred_check_branch
        %308 = sbr.rel (%p306) target = $region24
      $region23: #{wide_and_deep_forward.1} parent=11 // pred_region
        _
      $region24: #{wide_and_deep_forward.1} parent=11 // pred_fallthru
        _
      // Predicated region
      $region25: #{wide_and_deep_forward.1} parent=11 // pred_check
        %p309 = pneg %p154
      $region26: #{wide_and_deep_forward.1} parent=11 // pred_check_branch
        %311 = sbr.rel (%p309) target = $region28
      $region27: #{wide_and_deep_forward.1} parent=11 // pred_region
        _
      $region28: #{wide_and_deep_forward.1} parent=11 // pred_fallthru
        _
      // Predicated region
      $region29: #{wide_and_deep_forward.1} parent=11 // pred_check
        %p312 = pneg %p175
      $region30: #{wide_and_deep_forward.1} parent=11 // pred_check_branch
        %314 = sbr.rel (%p312) target = $region32
      $region31: #{wide_and_deep_forward.1} parent=11 // pred_region
        _
      $region32: #{wide_and_deep_forward.1} parent=11 // pred_fallthru
        _
      // Predicated region
      $region33: #{wide_and_deep_forward.1} parent=11 // pred_check
        %p315 = pneg %p196
      $region34: #{wide_and_deep_forward.1} parent=11 // pred_check_branch
        %317 = sbr.rel (%p315) target = $region36
      $region35: #{wide_and_deep_forward.1} parent=11 // pred_region
        _
      $region36: #{wide_and_deep_forward.1} parent=11 // pred_fallthru
        _
      // Predicated region
      $region37: #{wide_and_deep_forward.1} parent=11 // pred_check
        %p318 = pneg %p217
      $region38: #{wide_and_deep_forward.1} parent=11 // pred_check_branch
        %320 = sbr.rel (%p318) target = $region40
      $region39: #{wide_and_deep_forward.1} parent=11 // pred_region
        _
      $region40: #{wide_and_deep_forward.1} parent=11 // pred_fallthru
        _
      // Predicated region
      $region41: #{wide_and_deep_forward.1} parent=11 // pred_check
        %p321 = pneg %p238
      $region42: #{wide_and_deep_forward.1} parent=11 // pred_check_branch
        %323 = sbr.rel (%p321) target = $region44
      $region43: #{wide_and_deep_forward.1} parent=11 // pred_region
        _
      $region44: #{wide_and_deep_forward.1} parent=11 // pred_fallthru
        _
      // Predicated region
      $region45: #{wide_and_deep_forward.1} parent=11 // pred_check
        %p324 = pneg %p259
      $region46: #{wide_and_deep_forward.1} parent=11 // pred_check_branch
        %326 = sbr.rel (%p324) target = $region48
      $region47: #{wide_and_deep_forward.1} parent=11 // pred_region
        _
      $region48: #{wide_and_deep_forward.1} parent=11 // pred_fallthru
        _
    $region12: #{wide_and_deep_forward.1} parent=5 // pred_fallthru
      _
    %p327 = scmp.lt.s32.totalorder %s18, 2
    // Predicated region
    $region49: #{wide_and_deep_forward.1} parent=5 // pred_check
      %p328 = pneg %p327
    $region50: #{wide_and_deep_forward.1} parent=5 // pred_check_branch
      %330 = sbr.rel (%p328) target = $region52
    $region51: #{wide_and_deep_forward.1} parent=5 // pred_region
      // Predicated region
      $region53: #{wide_and_deep_forward.1} parent=51 // pred_check
        %p331 = pneg %p38
      $region54: #{wide_and_deep_forward.1} parent=51 // pred_check_branch
        %333 = sbr.rel (%p331) target = $region56
      $region55: #{wide_and_deep_forward.1} parent=51 // pred_region
        %p334 = scmp.lt.s32.totalorder %s18, 1
        %s335 = scalar_select %p334, %s18, 1
        %s336 = smul.addr %s335, 8
        %s337 = scalar_lea.vmem %s0, %s336
      $region56: #{wide_and_deep_forward.1} parent=51 // pred_fallthru
        _
      // Predicated region
      $region57: #{wide_and_deep_forward.1} parent=51 // pred_check
        %p338 = pneg %p64
      $region58: #{wide_and_deep_forward.1} parent=51 // pred_check_branch
        %340 = sbr.rel (%p338) target = $region60
      $region59: #{wide_and_deep_forward.1} parent=51 // pred_region
        %p341 = scmp.lt.s32.totalorder %s18, 1
        %s342 = scalar_select %p341, %s18, 1
        %s343 = smul.addr %s342, 2
        %s344 = scalar_lea.vmem %s1, %s343
      $region60: #{wide_and_deep_forward.1} parent=51 // pred_fallthru
        _
    $region52: #{wide_and_deep_forward.1} parent=5 // pred_fallthru
      _
    %p345 = scmp.le.s32.totalorder 1, %s18
    %p346 = scmp.lt.s32.totalorder %s18, 3
    %p347 = pnand %p345, %p346
    %p348 = pneg %p347
    // Predicated region
    $region61: #{wide_and_deep_forward.1} parent=5 // pred_check
      _
    $region62: #{wide_and_deep_forward.1} parent=5 // pred_check_branch
      %350 = sbr.rel (%p347) target = $region64
    $region63: #{wide_and_deep_forward.1} parent=5 // pred_region
      %s351 = ssub.s32 %s18, 1
      %p352 = scmp.lt.s32.totalorder %s23, 1
      %s353 = scalar_select %p352, %s23, 1
      %s354 = smul.addr %s353, 8
      %s355 = scalar_lea.vmem %s0, %s354
      %p356 = pneg %p44
      %p357 = pneg %p41
      %p358 = scmp.lt.s32.totalorder %s23, 1
      %s359 = scalar_select %p358, %s23, 1
      %s360 = smul.addr %s359, 2
      %s361 = scalar_lea.vmem %s1, %s360
      %p362 = pneg %p70
      %p363 = pneg %p67
      %p364 = pneg %p91
      %p365 = pneg %p88
      %p366 = pneg %p112
      %p367 = pneg %p109
      %p368 = pneg %p133
      %p369 = pneg %p130
      %p370 = pneg %p154
      %p371 = pneg %p151
      %p372 = pneg %p175
      %p373 = pneg %p172
      %p374 = pneg %p196
      %p375 = pneg %p193
      %p376 = pneg %p217
      %p377 = pneg %p214
      %p378 = pneg %p238
      %p379 = pneg %p235
      %p380 = pneg %p259
      %p381 = pneg %p256
      %p382 = pneg %p285
      %p383 = pneg %p282
      %p384 = scmp.lt.s32.totalorder %s23, 1
      %s385 = scalar_select %p384, %s23, 1
      %s386 = scalar_lea.vmem %s11, %s385
      %p387 = scmp.lt.s32.totalorder %s23, 1
      %s388 = scalar_select %p387, %s23, 1
      %s389 = smul.addr %s388, 8
      %s390 = scalar_lea.vmem %s0, %s389
      %p391 = scmp.lt.s32.totalorder %s23, 1
      %s392 = scalar_select %p391, %s23, 1
      %s393 = smul.addr %s392, 2
      %s394 = scalar_lea.vmem %s1, %s393
      %p395 = scmp.lt.s32.totalorder %s23, 1
      %s396 = scalar_select %p395, %s23, 1
      %s397 = scalar_lea.vmem %s11, %s396
      %v398 = vld [vmem:[%s394] sm:$0x3]
      %v399 = vld [vmem:[%s2] sm:$0xff]
      %v400 = vld [vmem:[%s2 + $0x8] sm:$0xff]
      %v401 = vlaneseq
      %v402 = vshrl.u32 %v401, 7
      %v403 = vadd.s32 %v402, 8
      %v404 = vadd.s32 %v402, 16
      %v405 = vadd.s32 %v402, 24
      %v406 = vadd.s32 %v402, 32
      %v407 = vadd.s32 %v402, 40
      %v408 = vadd.s32 %v402, 48
      %v409 = vadd.s32 %v402, 56
      %v410 = vadd.s32 %v402, 64
      %v411 = vadd.s32 %v402, 72
      %v412 = vadd.s32 %v402, 80
      %v413 = vadd.s32 %v402, 88
      %v414 = vadd.s32 %v402, 96
      %v415 = vperm.slane %v398, 0
      %vm416 = vcmp.eq.s32.totalorder %v402, %v415
      %vm417 = vcmp.eq.s32.totalorder %v403, %v415
      %vm418 = vcmp.eq.s32.totalorder %v404, %v415
      %vm419 = vcmp.eq.s32.totalorder %v405, %v415
      %vm420 = vcmp.eq.s32.totalorder %v406, %v415
      %vm421 = vcmp.eq.s32.totalorder %v407, %v415
      %vm422 = vcmp.eq.s32.totalorder %v408, %v415
      %vm423 = vcmp.eq.s32.totalorder %v409, %v415
      %vm424 = vcmp.eq.s32.totalorder %v410, %v415
      %vm425 = vcmp.eq.s32.totalorder %v411, %v415
      %vm426 = vcmp.eq.s32.totalorder %v412, %v415
      %vm427 = vcmp.eq.s32.totalorder %v413, %v415
      %vm428 = vcmp.eq.s32.totalorder %v414, %v415
      %v429 = vsel %vm416, 1, 0
      %v430 = vsel %vm417, 1, 0
      %v431 = vsel %vm418, 1, 0
      %v432 = vsel %vm419, 1, 0
      %v433 = vsel %vm420, 1, 0
      %v434 = vsel %vm421, 1, 0
      %v435 = vsel %vm422, 1, 0
      %v436 = vsel %vm423, 1, 0
      %v437 = vsel %vm424, 1, 0
      %v438 = vsel %vm425, 1, 0
      %v439 = vsel %vm426, 1, 0
      %v440 = vsel %vm427, 1, 0
      %v441 = vsel %vm428, 1, 0
      %v442 = vcvt.s32.f32 %v429
      %v443 = vcvt.s32.f32 %v430
      %v444 = vcvt.s32.f32 %v431
      %v445 = vcvt.s32.f32 %v432
      %v446 = vcvt.s32.f32 %v433
      %v447 = vcvt.s32.f32 %v434
      %v448 = vcvt.s32.f32 %v435
      %v449 = vcvt.s32.f32 %v436
      %v450 = vcvt.s32.f32 %v437
      %v451 = vcvt.s32.f32 %v438
      %v452 = vcvt.s32.f32 %v439
      %v453 = vcvt.s32.f32 %v440
      %v454 = vcvt.s32.f32 %v441
      %vm455 = vcmask 818176
      %v457 = vsel %vm455, %v399, 0
      %v460 = vsel %vm455, %v400, 0
      %vm462 = vcmask 1043456
      %v464 = vsel %vm462, %v454, 0
      %466 = vmatpush.msra.mxu0 0.0
      %467 = vmatpush.msra.mxu0 0.0
      %468 = vmatpush.msra.mxu0 0.0
      %v469 = vand.u32 %v464, 4294901760
      %470 = vmatpush.msra.mxu0 %v469
      %v471 = vand.u32 %v453, 4294901760
      %472 = vmatpush.msra.mxu0 %v471
      %v473 = vand.u32 %v452, 4294901760
      %474 = vmatpush.msra.mxu0 %v473
      %v475 = vand.u32 %v451, 4294901760
      %476 = vmatpush.msra.mxu0 %v475
      %v477 = vand.u32 %v450, 4294901760
      %478 = vmatpush.msra.mxu0 %v477
      %v479 = vand.u32 %v449, 4294901760
      %480 = vmatpush.msra.mxu0 %v479
      %v481 = vand.u32 %v448, 4294901760
      %482 = vmatpush.msra.mxu0 %v481
      %v483 = vand.u32 %v447, 4294901760
      %484 = vmatpush.msra.mxu0 %v483
      %v485 = vand.u32 %v446, 4294901760
      %486 = vmatpush.msra.mxu0 %v485
      %v487 = vand.u32 %v445, 4294901760
      %488 = vmatpush.msra.mxu0 %v487
      %v489 = vand.u32 %v444, 4294901760
      %490 = vmatpush.msra.mxu0 %v489
      %v491 = vand.u32 %v443, 4294901760
      %492 = vmatpush.msra.mxu0 %v491
      %v493 = vand.u32 %v442, 4294901760
      %494 = vmatpush.msra.mxu0 %v493
      %v495 = vand.u32 %v457, 4294901760
      %v496 = vsub.f32 %v457, %v495
      %v497 = vand.u32 %v496, 4294901760
      %v498 = vsub.f32 %v496, %v497
      %v499 = vand.u32 %v498, 4294901760
      %500 = vmatmul.f32.gmra.mxu0 %v499
      %v501 = vpop.f32.mrf.mxu0
      %v502 = vadd.f32 0.0, %v501
      %v503 = vand.u32 %v460, 4294901760
      %v504 = vsub.f32 %v460, %v503
      %v505 = vand.u32 %v504, 4294901760
      %v506 = vsub.f32 %v504, %v505
      %v507 = vand.u32 %v506, 4294901760
      %508 = vmatmul.f32.gmra.mxu0 %v507
      %v509 = vpop.f32.mrf.mxu0
      %v510 = vadd.f32 0.0, %v509
      %511 = vdwg.mxu0
      %512 = vmatpush.msra.mxu0 0.0
      %513 = vmatpush.msra.mxu0 0.0
      %514 = vmatpush.msra.mxu0 0.0
      %v515 = vand.u32 %v464, 4294901760
      %v516 = vsub.f32 %v464, %v515
      %v517 = vand.u32 %v516, 4294901760
      %v518 = vsub.f32 %v516, %v517
      %v519 = vand.u32 %v518, 4294901760
      %520 = vmatpush.msra.mxu0 %v519
      %v521 = vand.u32 %v453, 4294901760
      %v522 = vsub.f32 %v453, %v521
      %v523 = vand.u32 %v522, 4294901760
      %v524 = vsub.f32 %v522, %v523
      %v525 = vand.u32 %v524, 4294901760
      %526 = vmatpush.msra.mxu0 %v525
      %v527 = vand.u32 %v452, 4294901760
      %v528 = vsub.f32 %v452, %v527
      %v529 = vand.u32 %v528, 4294901760
      %v530 = vsub.f32 %v528, %v529
      %v531 = vand.u32 %v530, 4294901760
      %532 = vmatpush.msra.mxu0 %v531
      %v533 = vand.u32 %v451, 4294901760
      %v534 = vsub.f32 %v451, %v533
      %v535 = vand.u32 %v534, 4294901760
      %v536 = vsub.f32 %v534, %v535
      %v537 = vand.u32 %v536, 4294901760
      %538 = vmatpush.msra.mxu0 %v537
      %v539 = vand.u32 %v450, 4294901760
      %v540 = vsub.f32 %v450, %v539
      %v541 = vand.u32 %v540, 4294901760
      %v542 = vsub.f32 %v540, %v541
      %v543 = vand.u32 %v542, 4294901760
      %544 = vmatpush.msra.mxu0 %v543
      %v545 = vand.u32 %v449, 4294901760
      %v546 = vsub.f32 %v449, %v545
      %v547 = vand.u32 %v546, 4294901760
      %v548 = vsub.f32 %v546, %v547
      %v549 = vand.u32 %v548, 4294901760
      %550 = vmatpush.msra.mxu0 %v549
      %v551 = vand.u32 %v448, 4294901760
      %v552 = vsub.f32 %v448, %v551
      %v553 = vand.u32 %v552, 4294901760
      %v554 = vsub.f32 %v552, %v553
      %v555 = vand.u32 %v554, 4294901760
      %556 = vmatpush.msra.mxu0 %v555
      %v557 = vand.u32 %v447, 4294901760
      %v558 = vsub.f32 %v447, %v557
      %v559 = vand.u32 %v558, 4294901760
      %v560 = vsub.f32 %v558, %v559
      %v561 = vand.u32 %v560, 4294901760
      %562 = vmatpush.msra.mxu0 %v561
      %v563 = vand.u32 %v446, 4294901760
      %v564 = vsub.f32 %v446, %v563
      %v565 = vand.u32 %v564, 4294901760
      %v566 = vsub.f32 %v564, %v565
      %v567 = vand.u32 %v566, 4294901760
      %568 = vmatpush.msra.mxu0 %v567
      %v569 = vand.u32 %v445, 4294901760
      %v570 = vsub.f32 %v445, %v569
      %v571 = vand.u32 %v570, 4294901760
      %v572 = vsub.f32 %v570, %v571
      %v573 = vand.u32 %v572, 4294901760
      %574 = vmatpush.msra.mxu0 %v573
      %v575 = vand.u32 %v444, 4294901760
      %v576 = vsub.f32 %v444, %v575
      %v577 = vand.u32 %v576, 4294901760
      %v578 = vsub.f32 %v576, %v577
      %v579 = vand.u32 %v578, 4294901760
      %580 = vmatpush.msra.mxu0 %v579
      %v581 = vand.u32 %v443, 4294901760
      %v582 = vsub.f32 %v443, %v581
      %v583 = vand.u32 %v582, 4294901760
      %v584 = vsub.f32 %v582, %v583
      %v585 = vand.u32 %v584, 4294901760
      %586 = vmatpush.msra.mxu0 %v585
      %v587 = vand.u32 %v442, 4294901760
      %v588 = vsub.f32 %v442, %v587
      %v589 = vand.u32 %v588, 4294901760
      %v590 = vsub.f32 %v588, %v589
      %v591 = vand.u32 %v590, 4294901760
      %592 = vmatpush.msra.mxu0 %v591
      %v593 = vand.u32 %v457, 4294901760
      %594 = vmatmul.f32.gmra.mxu0 %v593
      %v595 = vpop.f32.mrf.mxu0
      %v596 = vadd.f32 %v502, %v595
      %v597 = vand.u32 %v460, 4294901760
      %598 = vmatmul.f32.gmra.mxu0 %v597
      %v599 = vpop.f32.mrf.mxu0
      %v600 = vadd.f32 %v510, %v599
      %601 = vdwg.mxu0
      %602 = vmatpush.msra.mxu0 0.0
      %603 = vmatpush.msra.mxu0 0.0
      %604 = vmatpush.msra.mxu0 0.0
      %v605 = vand.u32 %v464, 4294901760
      %v606 = vsub.f32 %v464, %v605
      %607 = vmatpush.msra.mxu0 %v606
      %v608 = vand.u32 %v453, 4294901760
      %v609 = vsub.f32 %v453, %v608
      %610 = vmatpush.msra.mxu0 %v609
      %v611 = vand.u32 %v452, 4294901760
      %v612 = vsub.f32 %v452, %v611
      %613 = vmatpush.msra.mxu0 %v612
      %v614 = vand.u32 %v451, 4294901760
      %v615 = vsub.f32 %v451, %v614
      %616 = vmatpush.msra.mxu0 %v615
      %v617 = vand.u32 %v450, 4294901760
      %v618 = vsub.f32 %v450, %v617
      %619 = vmatpush.msra.mxu0 %v618
      %v620 = vand.u32 %v449, 4294901760
      %v621 = vsub.f32 %v449, %v620
      %622 = vmatpush.msra.mxu0 %v621
      %v623 = vand.u32 %v448, 4294901760
      %v624 = vsub.f32 %v448, %v623
      %625 = vmatpush.msra.mxu0 %v624
      %v626 = vand.u32 %v447, 4294901760
      %v627 = vsub.f32 %v447, %v626
      %628 = vmatpush.msra.mxu0 %v627
      %v629 = vand.u32 %v446, 4294901760
      %v630 = vsub.f32 %v446, %v629
      %631 = vmatpush.msra.mxu0 %v630
      %v632 = vand.u32 %v445, 4294901760
      %v633 = vsub.f32 %v445, %v632
      %634 = vmatpush.msra.mxu0 %v633
      %v635 = vand.u32 %v444, 4294901760
      %v636 = vsub.f32 %v444, %v635
      %637 = vmatpush.msra.mxu0 %v636
      %v638 = vand.u32 %v443, 4294901760
      %v639 = vsub.f32 %v443, %v638
      %640 = vmatpush.msra.mxu0 %v639
      %v641 = vand.u32 %v442, 4294901760
      %v642 = vsub.f32 %v442, %v641
      %643 = vmatpush.msra.mxu0 %v642
      %v644 = vand.u32 %v457, 4294901760
      %v645 = vsub.f32 %v457, %v644
      %646 = vmatmul.f32.gmra.mxu0 %v645
      %v647 = vpop.f32.mrf.mxu0
      %v648 = vadd.f32 %v596, %v647
      %v649 = vand.u32 %v460, 4294901760
      %v650 = vsub.f32 %v460, %v649
      %651 = vmatmul.f32.gmra.mxu0 %v650
      %v652 = vpop.f32.mrf.mxu0
      %v653 = vadd.f32 %v600, %v652
      %654 = vdwg.mxu0
      %655 = vmatpush.msra.mxu0 0.0
      %656 = vmatpush.msra.mxu0 0.0
      %657 = vmatpush.msra.mxu0 0.0
      %v658 = vand.u32 %v464, 4294901760
      %659 = vmatpush.msra.mxu0 %v658
      %v660 = vand.u32 %v453, 4294901760
      %661 = vmatpush.msra.mxu0 %v660
      %v662 = vand.u32 %v452, 4294901760
      %663 = vmatpush.msra.mxu0 %v662
      %v664 = vand.u32 %v451, 4294901760
      %665 = vmatpush.msra.mxu0 %v664
      %v666 = vand.u32 %v450, 4294901760
      %667 = vmatpush.msra.mxu0 %v666
      %v668 = vand.u32 %v449, 4294901760
      %669 = vmatpush.msra.mxu0 %v668
      %v670 = vand.u32 %v448, 4294901760
      %671 = vmatpush.msra.mxu0 %v670
      %v672 = vand.u32 %v447, 4294901760
      %673 = vmatpush.msra.mxu0 %v672
      %v674 = vand.u32 %v446, 4294901760
      %675 = vmatpush.msra.mxu0 %v674
      %v676 = vand.u32 %v445, 4294901760
      %677 = vmatpush.msra.mxu0 %v676
      %v678 = vand.u32 %v444, 4294901760
      %679 = vmatpush.msra.mxu0 %v678
      %v680 = vand.u32 %v443, 4294901760
      %681 = vmatpush.msra.mxu0 %v680
      %v682 = vand.u32 %v442, 4294901760
      %683 = vmatpush.msra.mxu0 %v682
      %v684 = vand.u32 %v457, 4294901760
      %v685 = vsub.f32 %v457, %v684
      %v686 = vand.u32 %v685, 4294901760
      %687 = vmatmul.f32.gmra.mxu0 %v686
      %v688 = vpop.f32.mrf.mxu0
      %v689 = vadd.f32 %v648, %v688
      %v690 = vand.u32 %v460, 4294901760
      %v691 = vsub.f32 %v460, %v690
      %v692 = vand.u32 %v691, 4294901760
      %693 = vmatmul.f32.gmra.mxu0 %v692
      %v694 = vpop.f32.mrf.mxu0
      %v695 = vadd.f32 %v653, %v694
      %696 = vdwg.mxu0
      %697 = vmatpush.msra.mxu0 0.0
      %698 = vmatpush.msra.mxu0 0.0
      %699 = vmatpush.msra.mxu0 0.0
      %v700 = vand.u32 %v464, 4294901760
      %v701 = vsub.f32 %v464, %v700
      %v702 = vand.u32 %v701, 4294901760
      %703 = vmatpush.msra.mxu0 %v702
      %v704 = vand.u32 %v453, 4294901760
      %v705 = vsub.f32 %v453, %v704
      %v706 = vand.u32 %v705, 4294901760
      %707 = vmatpush.msra.mxu0 %v706
      %v708 = vand.u32 %v452, 4294901760
      %v709 = vsub.f32 %v452, %v708
      %v710 = vand.u32 %v709, 4294901760
      %711 = vmatpush.msra.mxu0 %v710
      %v712 = vand.u32 %v451, 4294901760
      %v713 = vsub.f32 %v451, %v712
      %v714 = vand.u32 %v713, 4294901760
      %715 = vmatpush.msra.mxu0 %v714
      %v716 = vand.u32 %v450, 4294901760
      %v717 = vsub.f32 %v450, %v716
      %v718 = vand.u32 %v717, 4294901760
      %719 = vmatpush.msra.mxu0 %v718
      %v720 = vand.u32 %v449, 4294901760
      %v721 = vsub.f32 %v449, %v720
      %v722 = vand.u32 %v721, 4294901760
      %723 = vmatpush.msra.mxu0 %v722
      %v724 = vand.u32 %v448, 4294901760
      %v725 = vsub.f32 %v448, %v724
      %v726 = vand.u32 %v725, 4294901760
      %727 = vmatpush.msra.mxu0 %v726
      %v728 = vand.u32 %v447, 4294901760
      %v729 = vsub.f32 %v447, %v728
      %v730 = vand.u32 %v729, 4294901760
      %731 = vmatpush.msra.mxu0 %v730
      %v732 = vand.u32 %v446, 4294901760
      %v733 = vsub.f32 %v446, %v732
      %v734 = vand.u32 %v733, 4294901760
      %735 = vmatpush.msra.mxu0 %v734
      %v736 = vand.u32 %v445, 4294901760
      %v737 = vsub.f32 %v445, %v736
      %v738 = vand.u32 %v737, 4294901760
      %739 = vmatpush.msra.mxu0 %v738
      %v740 = vand.u32 %v444, 4294901760
      %v741 = vsub.f32 %v444, %v740
      %v742 = vand.u32 %v741, 4294901760
      %743 = vmatpush.msra.mxu0 %v742
      %v744 = vand.u32 %v443, 4294901760
      %v745 = vsub.f32 %v443, %v744
      %v746 = vand.u32 %v745, 4294901760
      %747 = vmatpush.msra.mxu0 %v746
      %v748 = vand.u32 %v442, 4294901760
      %v749 = vsub.f32 %v442, %v748
      %v750 = vand.u32 %v749, 4294901760
      %751 = vmatpush.msra.mxu0 %v750
      %v752 = vand.u32 %v457, 4294901760
      %753 = vmatmul.f32.gmra.mxu0 %v752
      %v754 = vpop.f32.mrf.mxu0
      %v755 = vadd.f32 %v689, %v754
      %v756 = vand.u32 %v460, 4294901760
      %757 = vmatmul.f32.gmra.mxu0 %v756
      %v758 = vpop.f32.mrf.mxu0
      %v759 = vadd.f32 %v695, %v758
      %760 = vdwg.mxu0
      %761 = vmatpush.msra.mxu0 0.0
      %762 = vmatpush.msra.mxu0 0.0
      %763 = vmatpush.msra.mxu0 0.0
      %v764 = vand.u32 %v464, 4294901760
      %765 = vmatpush.msra.mxu0 %v764
      %v766 = vand.u32 %v453, 4294901760
      %767 = vmatpush.msra.mxu0 %v766
      %v768 = vand.u32 %v452, 4294901760
      %769 = vmatpush.msra.mxu0 %v768
      %v770 = vand.u32 %v451, 4294901760
      %771 = vmatpush.msra.mxu0 %v770
      %v772 = vand.u32 %v450, 4294901760
      %773 = vmatpush.msra.mxu0 %v772
      %v774 = vand.u32 %v449, 4294901760
      %775 = vmatpush.msra.mxu0 %v774
      %v776 = vand.u32 %v448, 4294901760
      %777 = vmatpush.msra.mxu0 %v776
      %v778 = vand.u32 %v447, 4294901760
      %779 = vmatpush.msra.mxu0 %v778
      %v780 = vand.u32 %v446, 4294901760
      %781 = vmatpush.msra.mxu0 %v780
      %v782 = vand.u32 %v445, 4294901760
      %783 = vmatpush.msra.mxu0 %v782
      %v784 = vand.u32 %v444, 4294901760
      %785 = vmatpush.msra.mxu0 %v784
      %v786 = vand.u32 %v443, 4294901760
      %787 = vmatpush.msra.mxu0 %v786
      %v788 = vand.u32 %v442, 4294901760
      %789 = vmatpush.msra.mxu0 %v788
      %v790 = vand.u32 %v457, 4294901760
      %791 = vmatmul.f32.gmra.mxu0 %v790
      %v792 = vpop.f32.mrf.mxu0
      %v793 = vadd.f32 %v755, %v792
      %v794 = vand.u32 %v460, 4294901760
      %795 = vmatmul.f32.gmra.mxu0 %v794
      %v796 = vpop.f32.mrf.mxu0
      %v797 = vadd.f32 %v759, %v796
      %798 = vdwg.mxu0
      %v799 = vld [vmem:[%s3] sm:$0xff]
      %v800 = vld [vmem:[%s3 + $0x8] sm:$0xff]
      %v801 = vperm.slane %v398, 1
      %vm802 = vcmp.eq.s32.totalorder %v402, %v801
      %vm803 = vcmp.eq.s32.totalorder %v403, %v801
      %vm804 = vcmp.eq.s32.totalorder %v404, %v801
      %vm805 = vcmp.eq.s32.totalorder %v405, %v801
      %vm806 = vcmp.eq.s32.totalorder %v406, %v801
      %vm807 = vcmp.eq.s32.totalorder %v407, %v801
      %vm808 = vcmp.eq.s32.totalorder %v408, %v801
      %v809 = vsel %vm802, 1, 0
      %v810 = vsel %vm803, 1, 0
      %v811 = vsel %vm804, 1, 0
      %v812 = vsel %vm805, 1, 0
      %v813 = vsel %vm806, 1, 0
      %v814 = vsel %vm807, 1, 0
      %v815 = vsel %vm808, 1, 0
      %v816 = vcvt.s32.f32 %v809
      %v817 = vcvt.s32.f32 %v810
      %v818 = vcvt.s32.f32 %v811
      %v819 = vcvt.s32.f32 %v812
      %v820 = vcvt.s32.f32 %v813
      %v821 = vcvt.s32.f32 %v814
      %v822 = vcvt.s32.f32 %v815
      %vm823 = vcmask 408576
      %v825 = vsel %vm823, %v799, 0
      %v828 = vsel %vm823, %v800, 0
      %vm830 = vcmask 1041408
      %v832 = vsel %vm830, %v822, 0
      %834 = vmatpush.msra.mxu0 0.0
      %835 = vmatpush.msra.mxu0 0.0
      %836 = vmatpush.msra.mxu0 0.0
      %837 = vmatpush.msra.mxu0 0.0
      %838 = vmatpush.msra.mxu0 0.0
      %839 = vmatpush.msra.mxu0 0.0
      %840 = vmatpush.msra.mxu0 0.0
      %841 = vmatpush.msra.mxu0 0.0
      %842 = vmatpush.msra.mxu0 0.0
      %v843 = vand.u32 %v832, 4294901760
      %844 = vmatpush.msra.mxu0 %v843
      %v845 = vand.u32 %v821, 4294901760
      %846 = vmatpush.msra.mxu0 %v845
      %v847 = vand.u32 %v820, 4294901760
      %848 = vmatpush.msra.mxu0 %v847
      %v849 = vand.u32 %v819, 4294901760
      %850 = vmatpush.msra.mxu0 %v849
      %v851 = vand.u32 %v818, 4294901760
      %852 = vmatpush.msra.mxu0 %v851
      %v853 = vand.u32 %v817, 4294901760
      %854 = vmatpush.msra.mxu0 %v853
      %v855 = vand.u32 %v816, 4294901760
      %856 = vmatpush.msra.mxu0 %v855
      %v857 = vand.u32 %v825, 4294901760
      %v858 = vsub.f32 %v825, %v857
      %v859 = vand.u32 %v858, 4294901760
      %v860 = vsub.f32 %v858, %v859
      %v861 = vand.u32 %v860, 4294901760
      %862 = vmatmul.f32.gmra.mxu0 %v861
      %v863 = vpop.f32.mrf.mxu0
      %v864 = vadd.f32 0.0, %v863
      %v865 = vand.u32 %v828, 4294901760
      %v866 = vsub.f32 %v828, %v865
      %v867 = vand.u32 %v866, 4294901760
      %v868 = vsub.f32 %v866, %v867
      %v869 = vand.u32 %v868, 4294901760
      %870 = vmatmul.f32.gmra.mxu0 %v869
      %v871 = vpop.f32.mrf.mxu0
      %v872 = vadd.f32 0.0, %v871
      %873 = vdwg.mxu0
      %874 = vmatpush.msra.mxu0 0.0
      %875 = vmatpush.msra.mxu0 0.0
      %876 = vmatpush.msra.mxu0 0.0
      %877 = vmatpush.msra.mxu0 0.0
      %878 = vmatpush.msra.mxu0 0.0
      %879 = vmatpush.msra.mxu0 0.0
      %880 = vmatpush.msra.mxu0 0.0
      %881 = vmatpush.msra.mxu0 0.0
      %882 = vmatpush.msra.mxu0 0.0
      %v883 = vand.u32 %v832, 4294901760
      %v884 = vsub.f32 %v832, %v883
      %v885 = vand.u32 %v884, 4294901760
      %v886 = vsub.f32 %v884, %v885
      %v887 = vand.u32 %v886, 4294901760
      %888 = vmatpush.msra.mxu0 %v887
      %v889 = vand.u32 %v821, 4294901760
      %v890 = vsub.f32 %v821, %v889
      %v891 = vand.u32 %v890, 4294901760
      %v892 = vsub.f32 %v890, %v891
      %v893 = vand.u32 %v892, 4294901760
      %894 = vmatpush.msra.mxu0 %v893
      %v895 = vand.u32 %v820, 4294901760
      %v896 = vsub.f32 %v820, %v895
      %v897 = vand.u32 %v896, 4294901760
      %v898 = vsub.f32 %v896, %v897
      %v899 = vand.u32 %v898, 4294901760
      %900 = vmatpush.msra.mxu0 %v899
      %v901 = vand.u32 %v819, 4294901760
      %v902 = vsub.f32 %v819, %v901
      %v903 = vand.u32 %v902, 4294901760
      %v904 = vsub.f32 %v902, %v903
      %v905 = vand.u32 %v904, 4294901760
      %906 = vmatpush.msra.mxu0 %v905
      %v907 = vand.u32 %v818, 4294901760
      %v908 = vsub.f32 %v818, %v907
      %v909 = vand.u32 %v908, 4294901760
      %v910 = vsub.f32 %v908, %v909
      %v911 = vand.u32 %v910, 4294901760
      %912 = vmatpush.msra.mxu0 %v911
      %v913 = vand.u32 %v817, 4294901760
      %v914 = vsub.f32 %v817, %v913
      %v915 = vand.u32 %v914, 4294901760
      %v916 = vsub.f32 %v914, %v915
      %v917 = vand.u32 %v916, 4294901760
      %918 = vmatpush.msra.mxu0 %v917
      %v919 = vand.u32 %v816, 4294901760
      %v920 = vsub.f32 %v816, %v919
      %v921 = vand.u32 %v920, 4294901760
      %v922 = vsub.f32 %v920, %v921
      %v923 = vand.u32 %v922, 4294901760
      %924 = vmatpush.msra.mxu0 %v923
      %v925 = vand.u32 %v825, 4294901760
      %926 = vmatmul.f32.gmra.mxu0 %v925
      %v927 = vpop.f32.mrf.mxu0
      %v928 = vadd.f32 %v864, %v927
      %v929 = vand.u32 %v828, 4294901760
      %930 = vmatmul.f32.gmra.mxu0 %v929
      %v931 = vpop.f32.mrf.mxu0
      %v932 = vadd.f32 %v872, %v931
      %933 = vdwg.mxu0
      %934 = vmatpush.msra.mxu0 0.0
      %935 = vmatpush.msra.mxu0 0.0
      %936 = vmatpush.msra.mxu0 0.0
      %937 = vmatpush.msra.mxu0 0.0
      %938 = vmatpush.msra.mxu0 0.0
      %939 = vmatpush.msra.mxu0 0.0
      %940 = vmatpush.msra.mxu0 0.0
      %941 = vmatpush.msra.mxu0 0.0
      %942 = vmatpush.msra.mxu0 0.0
      %v943 = vand.u32 %v832, 4294901760
      %v944 = vsub.f32 %v832, %v943
      %945 = vmatpush.msra.mxu0 %v944
      %v946 = vand.u32 %v821, 4294901760
      %v947 = vsub.f32 %v821, %v946
      %948 = vmatpush.msra.mxu0 %v947
      %v949 = vand.u32 %v820, 4294901760
      %v950 = vsub.f32 %v820, %v949
      %951 = vmatpush.msra.mxu0 %v950
      %v952 = vand.u32 %v819, 4294901760
      %v953 = vsub.f32 %v819, %v952
      %954 = vmatpush.msra.mxu0 %v953
      %v955 = vand.u32 %v818, 4294901760
      %v956 = vsub.f32 %v818, %v955
      %957 = vmatpush.msra.mxu0 %v956
      %v958 = vand.u32 %v817, 4294901760
      %v959 = vsub.f32 %v817, %v958
      %960 = vmatpush.msra.mxu0 %v959
      %v961 = vand.u32 %v816, 4294901760
      %v962 = vsub.f32 %v816, %v961
      %963 = vmatpush.msra.mxu0 %v962
      %v964 = vand.u32 %v825, 4294901760
      %v965 = vsub.f32 %v825, %v964
      %966 = vmatmul.f32.gmra.mxu0 %v965
      %v967 = vpop.f32.mrf.mxu0
      %v968 = vadd.f32 %v928, %v967
      %v969 = vand.u32 %v828, 4294901760
      %v970 = vsub.f32 %v828, %v969
      %971 = vmatmul.f32.gmra.mxu0 %v970
      %v972 = vpop.f32.mrf.mxu0
      %v973 = vadd.f32 %v932, %v972
      %974 = vdwg.mxu0
      %975 = vmatpush.msra.mxu0 0.0
      %976 = vmatpush.msra.mxu0 0.0
      %977 = vmatpush.msra.mxu0 0.0
      %978 = vmatpush.msra.mxu0 0.0
      %979 = vmatpush.msra.mxu0 0.0
      %980 = vmatpush.msra.mxu0 0.0
      %981 = vmatpush.msra.mxu0 0.0
      %982 = vmatpush.msra.mxu0 0.0
      %983 = vmatpush.msra.mxu0 0.0
      %v984 = vand.u32 %v832, 4294901760
      %985 = vmatpush.msra.mxu0 %v984
      %v986 = vand.u32 %v821, 4294901760
      %987 = vmatpush.msra.mxu0 %v986
      %v988 = vand.u32 %v820, 4294901760
      %989 = vmatpush.msra.mxu0 %v988
      %v990 = vand.u32 %v819, 4294901760
      %991 = vmatpush.msra.mxu0 %v990
      %v992 = vand.u32 %v818, 4294901760
      %993 = vmatpush.msra.mxu0 %v992
      %v994 = vand.u32 %v817, 4294901760
      %995 = vmatpush.msra.mxu0 %v994
      %v996 = vand.u32 %v816, 4294901760
      %997 = vmatpush.msra.mxu0 %v996
      %v998 = vand.u32 %v825, 4294901760
      %v999 = vsub.f32 %v825, %v998
      %v1000 = vand.u32 %v999, 4294901760
      %1001 = vmatmul.f32.gmra.mxu0 %v1000
      %v1002 = vpop.f32.mrf.mxu0
      %v1003 = vadd.f32 %v968, %v1002
      %v1004 = vand.u32 %v828, 4294901760
      %v1005 = vsub.f32 %v828, %v1004
      %v1006 = vand.u32 %v1005, 4294901760
      %1007 = vmatmul.f32.gmra.mxu0 %v1006
      %v1008 = vpop.f32.mrf.mxu0
      %v1009 = vadd.f32 %v973, %v1008
      %1010 = vdwg.mxu0
      %1011 = vmatpush.msra.mxu0 0.0
      %1012 = vmatpush.msra.mxu0 0.0
      %1013 = vmatpush.msra.mxu0 0.0
      %1014 = vmatpush.msra.mxu0 0.0
      %1015 = vmatpush.msra.mxu0 0.0
      %1016 = vmatpush.msra.mxu0 0.0
      %1017 = vmatpush.msra.mxu0 0.0
      %1018 = vmatpush.msra.mxu0 0.0
      %1019 = vmatpush.msra.mxu0 0.0
      %v1020 = vand.u32 %v832, 4294901760
      %v1021 = vsub.f32 %v832, %v1020
      %v1022 = vand.u32 %v1021, 4294901760
      %1023 = vmatpush.msra.mxu0 %v1022
      %v1024 = vand.u32 %v821, 4294901760
      %v1025 = vsub.f32 %v821, %v1024
      %v1026 = vand.u32 %v1025, 4294901760
      %1027 = vmatpush.msra.mxu0 %v1026
      %v1028 = vand.u32 %v820, 4294901760
      %v1029 = vsub.f32 %v820, %v1028
      %v1030 = vand.u32 %v1029, 4294901760
      %1031 = vmatpush.msra.mxu0 %v1030
      %v1032 = vand.u32 %v819, 4294901760
      %v1033 = vsub.f32 %v819, %v1032
      %v1034 = vand.u32 %v1033, 4294901760
      %1035 = vmatpush.msra.mxu0 %v1034
      %v1036 = vand.u32 %v818, 4294901760
      %v1037 = vsub.f32 %v818, %v1036
      %v1038 = vand.u32 %v1037, 4294901760
      %1039 = vmatpush.msra.mxu0 %v1038
      %v1040 = vand.u32 %v817, 4294901760
      %v1041 = vsub.f32 %v817, %v1040
      %v1042 = vand.u32 %v1041, 4294901760
      %1043 = vmatpush.msra.mxu0 %v1042
      %v1044 = vand.u32 %v816, 4294901760
      %v1045 = vsub.f32 %v816, %v1044
      %v1046 = vand.u32 %v1045, 4294901760
      %1047 = vmatpush.msra.mxu0 %v1046
      %v1048 = vand.u32 %v825, 4294901760
      %1049 = vmatmul.f32.gmra.mxu0 %v1048
      %v1050 = vpop.f32.mrf.mxu0
      %v1051 = vadd.f32 %v1003, %v1050
      %v1052 = vand.u32 %v828, 4294901760
      %1053 = vmatmul.f32.gmra.mxu0 %v1052
      %v1054 = vpop.f32.mrf.mxu0
      %v1055 = vadd.f32 %v1009, %v1054
      %1056 = vdwg.mxu0
      %1057 = vmatpush.msra.mxu0 0.0
      %1058 = vmatpush.msra.mxu0 0.0
      %1059 = vmatpush.msra.mxu0 0.0
      %1060 = vmatpush.msra.mxu0 0.0
      %1061 = vmatpush.msra.mxu0 0.0
      %1062 = vmatpush.msra.mxu0 0.0
      %1063 = vmatpush.msra.mxu0 0.0
      %1064 = vmatpush.msra.mxu0 0.0
      %1065 = vmatpush.msra.mxu0 0.0
      %v1066 = vand.u32 %v832, 4294901760
      %1067 = vmatpush.msra.mxu0 %v1066
      %v1068 = vand.u32 %v821, 4294901760
      %1069 = vmatpush.msra.mxu0 %v1068
      %v1070 = vand.u32 %v820, 4294901760
      %1071 = vmatpush.msra.mxu0 %v1070
      %v1072 = vand.u32 %v819, 4294901760
      %1073 = vmatpush.msra.mxu0 %v1072
      %v1074 = vand.u32 %v818, 4294901760
      %1075 = vmatpush.msra.mxu0 %v1074
      %v1076 = vand.u32 %v817, 4294901760
      %1077 = vmatpush.msra.mxu0 %v1076
      %v1078 = vand.u32 %v816, 4294901760
      %1079 = vmatpush.msra.mxu0 %v1078
      %v1080 = vand.u32 %v825, 4294901760
      %1081 = vmatmul.f32.gmra.mxu0 %v1080
      %v1082 = vpop.f32.mrf.mxu0
      %v1083 = vadd.f32 %v1051, %v1082
      %v1084 = vand.u32 %v828, 4294901760
      %1085 = vmatmul.f32.gmra.mxu0 %v1084
      %v1086 = vpop.f32.mrf.mxu0
      %v1087 = vadd.f32 %v1055, %v1086
      %1088 = vdwg.mxu0
      %v1089 = vld [vmem:[%s4] sm:$0xff]
      %v1090 = vld [vmem:[%s4 + $0x8] sm:$0xff]
      %v1091 = vld [vmem:[%s4 + $0x10] sm:$0xff]
      %v1092 = vld [vmem:[%s4 + $0x18] sm:$0xff]
      %v1093 = vld [vmem:[%s5] sm:$0xff]
      %v1094 = vld [vmem:[%s5 + $0x8] sm:$0xff]
      %v1095 = vld [vmem:[%s5 + $0x10] sm:$0xff]
      %v1096 = vld [vmem:[%s5 + $0x18] sm:$0xff]
      %1098 = vset.pattern.permute.xlu0 0
      %1099 = vperm.xlu0 %1098, %v1093
      %v1100 = vpop.permute.xlu0 %1099
      %1103 = vset.pattern.permute.xlu0 0
      %1104 = vperm.xlu0 %1103, %v1094
      %v1105 = vpop.permute.xlu0 %1104
      %1108 = vset.pattern.permute.xlu0 0
      %1109 = vperm.xlu0 %1108, %v1095
      %v1110 = vpop.permute.xlu0 %1109
      %1113 = vset.pattern.permute.xlu0 0
      %1114 = vperm.xlu0 %1113, %v1096
      %v1115 = vpop.permute.xlu0 %1114
      %vm1117 = vcmask 261120
      %v1119 = vsel %vm1117, %v1089, 0
      %v1122 = vsel %vm1117, %v1090, 0
      %v1125 = vsel %vm1117, %v1091, 0
      %v1128 = vsel %vm1117, %v1092, 0
      %1130 = vmatpush.msra.mxu0 0.0
      %1131 = vmatpush.msra.mxu0 0.0
      %1132 = vmatpush.msra.mxu0 0.0
      %1133 = vmatpush.msra.mxu0 0.0
      %1134 = vmatpush.msra.mxu0 0.0
      %1135 = vmatpush.msra.mxu0 0.0
      %1136 = vmatpush.msra.mxu0 0.0
      %1137 = vmatpush.msra.mxu0 0.0
      %1138 = vmatpush.msra.mxu0 0.0
      %1139 = vmatpush.msra.mxu0 0.0
      %1140 = vmatpush.msra.mxu0 0.0
      %1141 = vmatpush.msra.mxu0 0.0
      %v1142 = vand.u32 %v1087, 4294901760
      %1143 = vmatpush.msra.mxu0 %v1142
      %v1144 = vand.u32 %v1083, 4294901760
      %1145 = vmatpush.msra.mxu0 %v1144
      %v1146 = vand.u32 %v797, 4294901760
      %1147 = vmatpush.msra.mxu0 %v1146
      %v1148 = vand.u32 %v793, 4294901760
      %1149 = vmatpush.msra.mxu0 %v1148
      %v1150 = vand.u32 %v1119, 4294901760
      %v1151 = vsub.f32 %v1119, %v1150
      %v1152 = vand.u32 %v1151, 4294901760
      %v1153 = vsub.f32 %v1151, %v1152
      %v1154 = vand.u32 %v1153, 4294901760
      %1155 = vmatmul.f32.gmra.mxu0 %v1154
      %v1156 = vpop.f32.mrf.mxu0
      %v1157 = vadd.f32 %v1100, %v1156
      %v1158 = vand.u32 %v1122, 4294901760
      %v1159 = vsub.f32 %v1122, %v1158
      %v1160 = vand.u32 %v1159, 4294901760
      %v1161 = vsub.f32 %v1159, %v1160
      %v1162 = vand.u32 %v1161, 4294901760
      %1163 = vmatmul.f32.gmra.mxu0 %v1162
      %v1164 = vpop.f32.mrf.mxu0
      %v1165 = vadd.f32 %v1105, %v1164
      %v1166 = vand.u32 %v1125, 4294901760
      %v1167 = vsub.f32 %v1125, %v1166
      %v1168 = vand.u32 %v1167, 4294901760
      %v1169 = vsub.f32 %v1167, %v1168
      %v1170 = vand.u32 %v1169, 4294901760
      %1171 = vmatmul.f32.gmra.mxu0 %v1170
      %v1172 = vpop.f32.mrf.mxu0
      %v1173 = vadd.f32 %v1110, %v1172
      %v1174 = vand.u32 %v1128, 4294901760
      %v1175 = vsub.f32 %v1128, %v1174
      %v1176 = vand.u32 %v1175, 4294901760
      %v1177 = vsub.f32 %v1175, %v1176
      %v1178 = vand.u32 %v1177, 4294901760
      %1179 = vmatmul.f32.gmra.mxu0 %v1178
      %v1180 = vpop.f32.mrf.mxu0
      %v1181 = vadd.f32 %v1115, %v1180
      %1182 = vdwg.mxu0
      %1183 = vmatpush.msra.mxu0 0.0
      %1184 = vmatpush.msra.mxu0 0.0
      %1185 = vmatpush.msra.mxu0 0.0
      %1186 = vmatpush.msra.mxu0 0.0
      %1187 = vmatpush.msra.mxu0 0.0
      %1188 = vmatpush.msra.mxu0 0.0
      %1189 = vmatpush.msra.mxu0 0.0
      %1190 = vmatpush.msra.mxu0 0.0
      %1191 = vmatpush.msra.mxu0 0.0
      %1192 = vmatpush.msra.mxu0 0.0
      %1193 = vmatpush.msra.mxu0 0.0
      %1194 = vmatpush.msra.mxu0 0.0
      %v1195 = vand.u32 %v1087, 4294901760
      %v1196 = vsub.f32 %v1087, %v1195
      %v1197 = vand.u32 %v1196, 4294901760
      %v1198 = vsub.f32 %v1196, %v1197
      %v1199 = vand.u32 %v1198, 4294901760
      %1200 = vmatpush.msra.mxu0 %v1199
      %v1201 = vand.u32 %v1083, 4294901760
      %v1202 = vsub.f32 %v1083, %v1201
      %v1203 = vand.u32 %v1202, 4294901760
      %v1204 = vsub.f32 %v1202, %v1203
      %v1205 = vand.u32 %v1204, 4294901760
      %1206 = vmatpush.msra.mxu0 %v1205
      %v1207 = vand.u32 %v797, 4294901760
      %v1208 = vsub.f32 %v797, %v1207
      %v1209 = vand.u32 %v1208, 4294901760
      %v1210 = vsub.f32 %v1208, %v1209
      %v1211 = vand.u32 %v1210, 4294901760
      %1212 = vmatpush.msra.mxu0 %v1211
      %v1213 = vand.u32 %v793, 4294901760
      %v1214 = vsub.f32 %v793, %v1213
      %v1215 = vand.u32 %v1214, 4294901760
      %v1216 = vsub.f32 %v1214, %v1215
      %v1217 = vand.u32 %v1216, 4294901760
      %1218 = vmatpush.msra.mxu0 %v1217
      %v1219 = vand.u32 %v1119, 4294901760
      %1220 = vmatmul.f32.gmra.mxu0 %v1219
      %v1221 = vpop.f32.mrf.mxu0
      %v1222 = vadd.f32 %v1157, %v1221
      %v1223 = vand.u32 %v1122, 4294901760
      %1224 = vmatmul.f32.gmra.mxu0 %v1223
      %v1225 = vpop.f32.mrf.mxu0
      %v1226 = vadd.f32 %v1165, %v1225
      %v1227 = vand.u32 %v1125, 4294901760
      %1228 = vmatmul.f32.gmra.mxu0 %v1227
      %v1229 = vpop.f32.mrf.mxu0
      %v1230 = vadd.f32 %v1173, %v1229
      %v1231 = vand.u32 %v1128, 4294901760
      %1232 = vmatmul.f32.gmra.mxu0 %v1231
      %v1233 = vpop.f32.mrf.mxu0
      %v1234 = vadd.f32 %v1181, %v1233
      %1235 = vdwg.mxu0
      %1236 = vmatpush.msra.mxu0 0.0
      %1237 = vmatpush.msra.mxu0 0.0
      %1238 = vmatpush.msra.mxu0 0.0
      %1239 = vmatpush.msra.mxu0 0.0
      %1240 = vmatpush.msra.mxu0 0.0
      %1241 = vmatpush.msra.mxu0 0.0
      %1242 = vmatpush.msra.mxu0 0.0
      %1243 = vmatpush.msra.mxu0 0.0
      %1244 = vmatpush.msra.mxu0 0.0
      %1245 = vmatpush.msra.mxu0 0.0
      %1246 = vmatpush.msra.mxu0 0.0
      %1247 = vmatpush.msra.mxu0 0.0
      %v1248 = vand.u32 %v1087, 4294901760
      %v1249 = vsub.f32 %v1087, %v1248
      %1250 = vmatpush.msra.mxu0 %v1249
      %v1251 = vand.u32 %v1083, 4294901760
      %v1252 = vsub.f32 %v1083, %v1251
      %1253 = vmatpush.msra.mxu0 %v1252
      %v1254 = vand.u32 %v797, 4294901760
      %v1255 = vsub.f32 %v797, %v1254
      %1256 = vmatpush.msra.mxu0 %v1255
      %v1257 = vand.u32 %v793, 4294901760
      %v1258 = vsub.f32 %v793, %v1257
      %1259 = vmatpush.msra.mxu0 %v1258
      %v1260 = vand.u32 %v1119, 4294901760
      %v1261 = vsub.f32 %v1119, %v1260
      %1262 = vmatmul.f32.gmra.mxu0 %v1261
      %v1263 = vpop.f32.mrf.mxu0
      %v1264 = vadd.f32 %v1222, %v1263
      %v1265 = vand.u32 %v1122, 4294901760
      %v1266 = vsub.f32 %v1122, %v1265
      %1267 = vmatmul.f32.gmra.mxu0 %v1266
      %v1268 = vpop.f32.mrf.mxu0
      %v1269 = vadd.f32 %v1226, %v1268
      %v1270 = vand.u32 %v1125, 4294901760
      %v1271 = vsub.f32 %v1125, %v1270
      %1272 = vmatmul.f32.gmra.mxu0 %v1271
      %v1273 = vpop.f32.mrf.mxu0
      %v1274 = vadd.f32 %v1230, %v1273
      %v1275 = vand.u32 %v1128, 4294901760
      %v1276 = vsub.f32 %v1128, %v1275
      %1277 = vmatmul.f32.gmra.mxu0 %v1276
      %v1278 = vpop.f32.mrf.mxu0
      %v1279 = vadd.f32 %v1234, %v1278
      %1280 = vdwg.mxu0
      %1281 = vmatpush.msra.mxu0 0.0
      %1282 = vmatpush.msra.mxu0 0.0
      %1283 = vmatpush.msra.mxu0 0.0
      %1284 = vmatpush.msra.mxu0 0.0
      %1285 = vmatpush.msra.mxu0 0.0
      %1286 = vmatpush.msra.mxu0 0.0
      %1287 = vmatpush.msra.mxu0 0.0
      %1288 = vmatpush.msra.mxu0 0.0
      %1289 = vmatpush.msra.mxu0 0.0
      %1290 = vmatpush.msra.mxu0 0.0
      %1291 = vmatpush.msra.mxu0 0.0
      %1292 = vmatpush.msra.mxu0 0.0
      %v1293 = vand.u32 %v1087, 4294901760
      %1294 = vmatpush.msra.mxu0 %v1293
      %v1295 = vand.u32 %v1083, 4294901760
      %1296 = vmatpush.msra.mxu0 %v1295
      %v1297 = vand.u32 %v797, 4294901760
      %1298 = vmatpush.msra.mxu0 %v1297
      %v1299 = vand.u32 %v793, 4294901760
      %1300 = vmatpush.msra.mxu0 %v1299
      %v1301 = vand.u32 %v1119, 4294901760
      %v1302 = vsub.f32 %v1119, %v1301
      %v1303 = vand.u32 %v1302, 4294901760
      %1304 = vmatmul.f32.gmra.mxu0 %v1303
      %v1305 = vpop.f32.mrf.mxu0
      %v1306 = vadd.f32 %v1264, %v1305
      %v1307 = vand.u32 %v1122, 4294901760
      %v1308 = vsub.f32 %v1122, %v1307
      %v1309 = vand.u32 %v1308, 4294901760
      %1310 = vmatmul.f32.gmra.mxu0 %v1309
      %v1311 = vpop.f32.mrf.mxu0
      %v1312 = vadd.f32 %v1269, %v1311
      %v1313 = vand.u32 %v1125, 4294901760
      %v1314 = vsub.f32 %v1125, %v1313
      %v1315 = vand.u32 %v1314, 4294901760
      %1316 = vmatmul.f32.gmra.mxu0 %v1315
      %v1317 = vpop.f32.mrf.mxu0
      %v1318 = vadd.f32 %v1274, %v1317
      %v1319 = vand.u32 %v1128, 4294901760
      %v1320 = vsub.f32 %v1128, %v1319
      %v1321 = vand.u32 %v1320, 4294901760
      %1322 = vmatmul.f32.gmra.mxu0 %v1321
      %v1323 = vpop.f32.mrf.mxu0
      %v1324 = vadd.f32 %v1279, %v1323
      %1325 = vdwg.mxu0
      %1326 = vmatpush.msra.mxu0 0.0
      %1327 = vmatpush.msra.mxu0 0.0
      %1328 = vmatpush.msra.mxu0 0.0
      %1329 = vmatpush.msra.mxu0 0.0
      %1330 = vmatpush.msra.mxu0 0.0
      %1331 = vmatpush.msra.mxu0 0.0
      %1332 = vmatpush.msra.mxu0 0.0
      %1333 = vmatpush.msra.mxu0 0.0
      %1334 = vmatpush.msra.mxu0 0.0
      %1335 = vmatpush.msra.mxu0 0.0
      %1336 = vmatpush.msra.mxu0 0.0
      %1337 = vmatpush.msra.mxu0 0.0
      %v1338 = vand.u32 %v1087, 4294901760
      %v1339 = vsub.f32 %v1087, %v1338
      %v1340 = vand.u32 %v1339, 4294901760
      %1341 = vmatpush.msra.mxu0 %v1340
      %v1342 = vand.u32 %v1083, 4294901760
      %v1343 = vsub.f32 %v1083, %v1342
      %v1344 = vand.u32 %v1343, 4294901760
      %1345 = vmatpush.msra.mxu0 %v1344
      %v1346 = vand.u32 %v797, 4294901760
      %v1347 = vsub.f32 %v797, %v1346
      %v1348 = vand.u32 %v1347, 4294901760
      %1349 = vmatpush.msra.mxu0 %v1348
      %v1350 = vand.u32 %v793, 4294901760
      %v1351 = vsub.f32 %v793, %v1350
      %v1352 = vand.u32 %v1351, 4294901760
      %1353 = vmatpush.msra.mxu0 %v1352
      %v1354 = vand.u32 %v1119, 4294901760
      %1355 = vmatmul.f32.gmra.mxu0 %v1354
      %v1356 = vpop.f32.mrf.mxu0
      %v1357 = vadd.f32 %v1306, %v1356
      %v1358 = vand.u32 %v1122, 4294901760
      %1359 = vmatmul.f32.gmra.mxu0 %v1358
      %v1360 = vpop.f32.mrf.mxu0
      %v1361 = vadd.f32 %v1312, %v1360
      %v1362 = vand.u32 %v1125, 4294901760
      %1363 = vmatmul.f32.gmra.mxu0 %v1362
      %v1364 = vpop.f32.mrf.mxu0
      %v1365 = vadd.f32 %v1318, %v1364
      %v1366 = vand.u32 %v1128, 4294901760
      %1367 = vmatmul.f32.gmra.mxu0 %v1366
      %v1368 = vpop.f32.mrf.mxu0
      %v1369 = vadd.f32 %v1324, %v1368
      %1370 = vdwg.mxu0
      %1371 = vmatpush.msra.mxu0 0.0
      %1372 = vmatpush.msra.mxu0 0.0
      %1373 = vmatpush.msra.mxu0 0.0
      %1374 = vmatpush.msra.mxu0 0.0
      %1375 = vmatpush.msra.mxu0 0.0
      %1376 = vmatpush.msra.mxu0 0.0
      %1377 = vmatpush.msra.mxu0 0.0
      %1378 = vmatpush.msra.mxu0 0.0
      %1379 = vmatpush.msra.mxu0 0.0
      %1380 = vmatpush.msra.mxu0 0.0
      %1381 = vmatpush.msra.mxu0 0.0
      %1382 = vmatpush.msra.mxu0 0.0
      %v1383 = vand.u32 %v1087, 4294901760
      %1384 = vmatpush.msra.mxu0 %v1383
      %v1385 = vand.u32 %v1083, 4294901760
      %1386 = vmatpush.msra.mxu0 %v1385
      %v1387 = vand.u32 %v797, 4294901760
      %1388 = vmatpush.msra.mxu0 %v1387
      %v1389 = vand.u32 %v793, 4294901760
      %1390 = vmatpush.msra.mxu0 %v1389
      %v1391 = vand.u32 %v1119, 4294901760
      %1392 = vmatmul.f32.gmra.mxu0 %v1391
      %v1393 = vpop.f32.mrf.mxu0
      %v1394 = vadd.f32 %v1357, %v1393
      %v1395 = vand.u32 %v1122, 4294901760
      %1396 = vmatmul.f32.gmra.mxu0 %v1395
      %v1397 = vpop.f32.mrf.mxu0
      %v1398 = vadd.f32 %v1361, %v1397
      %v1399 = vand.u32 %v1125, 4294901760
      %1400 = vmatmul.f32.gmra.mxu0 %v1399
      %v1401 = vpop.f32.mrf.mxu0
      %v1402 = vadd.f32 %v1365, %v1401
      %v1403 = vand.u32 %v1128, 4294901760
      %1404 = vmatmul.f32.gmra.mxu0 %v1403
      %v1405 = vpop.f32.mrf.mxu0
      %v1406 = vadd.f32 %v1369, %v1405
      %1407 = vdwg.mxu0
      %v1408 = vmax.f32 %v1394, 0.0
      %v1409 = vmax.f32 %v1398, 0.0
      %v1410 = vmax.f32 %v1402, 0.0
      %v1411 = vmax.f32 %v1406, 0.0
      %v1412 = vld [vmem:[%s6] sm:$0xff]
      %v1413 = vld [vmem:[%s6 + $0x8] sm:$0xff]
      %v1414 = vld [vmem:[%s7] sm:$0xff]
      %v1415 = vld [vmem:[%s7 + $0x8] sm:$0xff]
      %1417 = vset.pattern.permute.xlu0 0
      %1418 = vperm.xlu0 %1417, %v1414
      %v1419 = vpop.permute.xlu0 %1418
      %1422 = vset.pattern.permute.xlu0 0
      %1423 = vperm.xlu0 %1422, %v1415
      %v1424 = vpop.permute.xlu0 %1423
      %v1427 = vsel %vm1117, %v1412, 0
      %v1430 = vsel %vm1117, %v1413, 0
      %1432 = vmatpush.msra.mxu0 0.0
      %1433 = vmatpush.msra.mxu0 0.0
      %1434 = vmatpush.msra.mxu0 0.0
      %1435 = vmatpush.msra.mxu0 0.0
      %1436 = vmatpush.msra.mxu0 0.0
      %1437 = vmatpush.msra.mxu0 0.0
      %1438 = vmatpush.msra.mxu0 0.0
      %1439 = vmatpush.msra.mxu0 0.0
      %1440 = vmatpush.msra.mxu0 0.0
      %1441 = vmatpush.msra.mxu0 0.0
      %1442 = vmatpush.msra.mxu0 0.0
      %1443 = vmatpush.msra.mxu0 0.0
      %v1444 = vand.u32 %v1411, 4294901760
      %1445 = vmatpush.msra.mxu0 %v1444
      %v1446 = vand.u32 %v1410, 4294901760
      %1447 = vmatpush.msra.mxu0 %v1446
      %v1448 = vand.u32 %v1409, 4294901760
      %1449 = vmatpush.msra.mxu0 %v1448
      %v1450 = vand.u32 %v1408, 4294901760
      %1451 = vmatpush.msra.mxu0 %v1450
      %v1452 = vand.u32 %v1427, 4294901760
      %v1453 = vsub.f32 %v1427, %v1452
      %v1454 = vand.u32 %v1453, 4294901760
      %v1455 = vsub.f32 %v1453, %v1454
      %v1456 = vand.u32 %v1455, 4294901760
      %1457 = vmatmul.f32.gmra.mxu0 %v1456
      %v1458 = vpop.f32.mrf.mxu0
      %v1459 = vadd.f32 %v1419, %v1458
      %v1460 = vand.u32 %v1430, 4294901760
      %v1461 = vsub.f32 %v1430, %v1460
      %v1462 = vand.u32 %v1461, 4294901760
      %v1463 = vsub.f32 %v1461, %v1462
      %v1464 = vand.u32 %v1463, 4294901760
      %1465 = vmatmul.f32.gmra.mxu0 %v1464
      %v1466 = vpop.f32.mrf.mxu0
      %v1467 = vadd.f32 %v1424, %v1466
      %1468 = vdwg.mxu0
      %1469 = vmatpush.msra.mxu0 0.0
      %1470 = vmatpush.msra.mxu0 0.0
      %1471 = vmatpush.msra.mxu0 0.0
      %1472 = vmatpush.msra.mxu0 0.0
      %1473 = vmatpush.msra.mxu0 0.0
      %1474 = vmatpush.msra.mxu0 0.0
      %1475 = vmatpush.msra.mxu0 0.0
      %1476 = vmatpush.msra.mxu0 0.0
      %1477 = vmatpush.msra.mxu0 0.0
      %1478 = vmatpush.msra.mxu0 0.0
      %1479 = vmatpush.msra.mxu0 0.0
      %1480 = vmatpush.msra.mxu0 0.0
      %v1481 = vand.u32 %v1411, 4294901760
      %v1482 = vsub.f32 %v1411, %v1481
      %v1483 = vand.u32 %v1482, 4294901760
      %v1484 = vsub.f32 %v1482, %v1483
      %v1485 = vand.u32 %v1484, 4294901760
      %1486 = vmatpush.msra.mxu0 %v1485
      %v1487 = vand.u32 %v1410, 4294901760
      %v1488 = vsub.f32 %v1410, %v1487
      %v1489 = vand.u32 %v1488, 4294901760
      %v1490 = vsub.f32 %v1488, %v1489
      %v1491 = vand.u32 %v1490, 4294901760
      %1492 = vmatpush.msra.mxu0 %v1491
      %v1493 = vand.u32 %v1409, 4294901760
      %v1494 = vsub.f32 %v1409, %v1493
      %v1495 = vand.u32 %v1494, 4294901760
      %v1496 = vsub.f32 %v1494, %v1495
      %v1497 = vand.u32 %v1496, 4294901760
      %1498 = vmatpush.msra.mxu0 %v1497
      %v1499 = vand.u32 %v1408, 4294901760
      %v1500 = vsub.f32 %v1408, %v1499
      %v1501 = vand.u32 %v1500, 4294901760
      %v1502 = vsub.f32 %v1500, %v1501
      %v1503 = vand.u32 %v1502, 4294901760
      %1504 = vmatpush.msra.mxu0 %v1503
      %v1505 = vand.u32 %v1427, 4294901760
      %1506 = vmatmul.f32.gmra.mxu0 %v1505
      %v1507 = vpop.f32.mrf.mxu0
      %v1508 = vadd.f32 %v1459, %v1507
      %v1509 = vand.u32 %v1430, 4294901760
      %1510 = vmatmul.f32.gmra.mxu0 %v1509
      %v1511 = vpop.f32.mrf.mxu0
      %v1512 = vadd.f32 %v1467, %v1511
      %1513 = vdwg.mxu0
      %1514 = vmatpush.msra.mxu0 0.0
      %1515 = vmatpush.msra.mxu0 0.0
      %1516 = vmatpush.msra.mxu0 0.0
      %1517 = vmatpush.msra.mxu0 0.0
      %1518 = vmatpush.msra.mxu0 0.0
      %1519 = vmatpush.msra.mxu0 0.0
      %1520 = vmatpush.msra.mxu0 0.0
      %1521 = vmatpush.msra.mxu0 0.0
      %1522 = vmatpush.msra.mxu0 0.0
      %1523 = vmatpush.msra.mxu0 0.0
      %1524 = vmatpush.msra.mxu0 0.0
      %1525 = vmatpush.msra.mxu0 0.0
      %v1526 = vand.u32 %v1411, 4294901760
      %v1527 = vsub.f32 %v1411, %v1526
      %1528 = vmatpush.msra.mxu0 %v1527
      %v1529 = vand.u32 %v1410, 4294901760
      %v1530 = vsub.f32 %v1410, %v1529
      %1531 = vmatpush.msra.mxu0 %v1530
      %v1532 = vand.u32 %v1409, 4294901760
      %v1533 = vsub.f32 %v1409, %v1532
      %1534 = vmatpush.msra.mxu0 %v1533
      %v1535 = vand.u32 %v1408, 4294901760
      %v1536 = vsub.f32 %v1408, %v1535
      %1537 = vmatpush.msra.mxu0 %v1536
      %v1538 = vand.u32 %v1427, 4294901760
      %v1539 = vsub.f32 %v1427, %v1538
      %1540 = vmatmul.f32.gmra.mxu0 %v1539
      %v1541 = vpop.f32.mrf.mxu0
      %v1542 = vadd.f32 %v1508, %v1541
      %v1543 = vand.u32 %v1430, 4294901760
      %v1544 = vsub.f32 %v1430, %v1543
      %1545 = vmatmul.f32.gmra.mxu0 %v1544
      %v1546 = vpop.f32.mrf.mxu0
      %v1547 = vadd.f32 %v1512, %v1546
      %1548 = vdwg.mxu0
      %1549 = vmatpush.msra.mxu0 0.0
      %1550 = vmatpush.msra.mxu0 0.0
      %1551 = vmatpush.msra.mxu0 0.0
      %1552 = vmatpush.msra.mxu0 0.0
      %1553 = vmatpush.msra.mxu0 0.0
      %1554 = vmatpush.msra.mxu0 0.0
      %1555 = vmatpush.msra.mxu0 0.0
      %1556 = vmatpush.msra.mxu0 0.0
      %1557 = vmatpush.msra.mxu0 0.0
      %1558 = vmatpush.msra.mxu0 0.0
      %1559 = vmatpush.msra.mxu0 0.0
      %1560 = vmatpush.msra.mxu0 0.0
      %v1561 = vand.u32 %v1411, 4294901760
      %1562 = vmatpush.msra.mxu0 %v1561
      %v1563 = vand.u32 %v1410, 4294901760
      %1564 = vmatpush.msra.mxu0 %v1563
      %v1565 = vand.u32 %v1409, 4294901760
      %1566 = vmatpush.msra.mxu0 %v1565
      %v1567 = vand.u32 %v1408, 4294901760
      %1568 = vmatpush.msra.mxu0 %v1567
      %v1569 = vand.u32 %v1427, 4294901760
      %v1570 = vsub.f32 %v1427, %v1569
      %v1571 = vand.u32 %v1570, 4294901760
      %1572 = vmatmul.f32.gmra.mxu0 %v1571
      %v1573 = vpop.f32.mrf.mxu0
      %v1574 = vadd.f32 %v1542, %v1573
      %v1575 = vand.u32 %v1430, 4294901760
      %v1576 = vsub.f32 %v1430, %v1575
      %v1577 = vand.u32 %v1576, 4294901760
      %1578 = vmatmul.f32.gmra.mxu0 %v1577
      %v1579 = vpop.f32.mrf.mxu0
      %v1580 = vadd.f32 %v1547, %v1579
      %1581 = vdwg.mxu0
      %1582 = vmatpush.msra.mxu0 0.0
      %1583 = vmatpush.msra.mxu0 0.0
      %1584 = vmatpush.msra.mxu0 0.0
      %1585 = vmatpush.msra.mxu0 0.0
      %1586 = vmatpush.msra.mxu0 0.0
      %1587 = vmatpush.msra.mxu0 0.0
      %1588 = vmatpush.msra.mxu0 0.0
      %1589 = vmatpush.msra.mxu0 0.0
      %1590 = vmatpush.msra.mxu0 0.0
      %1591 = vmatpush.msra.mxu0 0.0
      %1592 = vmatpush.msra.mxu0 0.0
      %1593 = vmatpush.msra.mxu0 0.0
      %v1594 = vand.u32 %v1411, 4294901760
      %v1595 = vsub.f32 %v1411, %v1594
      %v1596 = vand.u32 %v1595, 4294901760
      %1597 = vmatpush.msra.mxu0 %v1596
      %v1598 = vand.u32 %v1410, 4294901760
      %v1599 = vsub.f32 %v1410, %v1598
      %v1600 = vand.u32 %v1599, 4294901760
      %1601 = vmatpush.msra.mxu0 %v1600
      %v1602 = vand.u32 %v1409, 4294901760
      %v1603 = vsub.f32 %v1409, %v1602
      %v1604 = vand.u32 %v1603, 4294901760
      %1605 = vmatpush.msra.mxu0 %v1604
      %v1606 = vand.u32 %v1408, 4294901760
      %v1607 = vsub.f32 %v1408, %v1606
      %v1608 = vand.u32 %v1607, 4294901760
      %1609 = vmatpush.msra.mxu0 %v1608
      %v1610 = vand.u32 %v1427, 4294901760
      %1611 = vmatmul.f32.gmra.mxu0 %v1610
      %v1612 = vpop.f32.mrf.mxu0
      %v1613 = vadd.f32 %v1574, %v1612
      %v1614 = vand.u32 %v1430, 4294901760
      %1615 = vmatmul.f32.gmra.mxu0 %v1614
      %v1616 = vpop.f32.mrf.mxu0
      %v1617 = vadd.f32 %v1580, %v1616
      %1618 = vdwg.mxu0
      %1619 = vmatpush.msra.mxu0 0.0
      %1620 = vmatpush.msra.mxu0 0.0
      %1621 = vmatpush.msra.mxu0 0.0
      %1622 = vmatpush.msra.mxu0 0.0
      %1623 = vmatpush.msra.mxu0 0.0
      %1624 = vmatpush.msra.mxu0 0.0
      %1625 = vmatpush.msra.mxu0 0.0
      %1626 = vmatpush.msra.mxu0 0.0
      %1627 = vmatpush.msra.mxu0 0.0
      %1628 = vmatpush.msra.mxu0 0.0
      %1629 = vmatpush.msra.mxu0 0.0
      %1630 = vmatpush.msra.mxu0 0.0
      %v1631 = vand.u32 %v1411, 4294901760
      %1632 = vmatpush.msra.mxu0 %v1631
      %v1633 = vand.u32 %v1410, 4294901760
      %1634 = vmatpush.msra.mxu0 %v1633
      %v1635 = vand.u32 %v1409, 4294901760
      %1636 = vmatpush.msra.mxu0 %v1635
      %v1637 = vand.u32 %v1408, 4294901760
      %1638 = vmatpush.msra.mxu0 %v1637
      %v1639 = vand.u32 %v1427, 4294901760
      %1640 = vmatmul.f32.gmra.mxu0 %v1639
      %v1641 = vpop.f32.mrf.mxu0
      %v1642 = vadd.f32 %v1613, %v1641
      %v1643 = vand.u32 %v1430, 4294901760
      %1644 = vmatmul.f32.gmra.mxu0 %v1643
      %v1645 = vpop.f32.mrf.mxu0
      %v1646 = vadd.f32 %v1617, %v1645
      %1647 = vdwg.mxu0
      %v1648 = vmax.f32 %v1642, 0.0
      %v1649 = vmax.f32 %v1646, 0.0
      %v1650 = vld [vmem:[%s8] sm:$0xff]
      %v1651 = vld [vmem:[%s9] sm:$0xff]
      %v1652 = vld [vmem:[%s9 + $0x8] sm:$0xff]
      %v1653 = vld [vmem:[%s390] sm:$0xff]
      %1655 = vset.pattern.permute.xlu0 0
      %1656 = vperm.xlu0 %1655, %v1650
      %v1657 = vpop.permute.xlu0 %1656
      %v1659 = vmul.f32 %v1653, %v1657
      %v1660 = vrot.slane %v1659, 4
      %v1661 = vadd.f32 %v1659, %v1660
      %v1662 = vrot.slane %v1661, 2
      %v1663 = vadd.f32 %v1661, %v1662
      %v1664 = vrot.slane %v1663, 1
      %v1665 = vadd.f32 %v1663, %v1664
      %1667 = vset.pattern.permute.xlu0 0
      %1668 = vperm.xlu0 %1667, %v1651
      %v1669 = vpop.permute.xlu0 %1668
      %1672 = vset.pattern.permute.xlu0 0
      %1673 = vperm.xlu0 %1672, %v1652
      %v1674 = vpop.permute.xlu0 %1673
      %v1676 = vmul.f32 %v1648, %v1669
      %v1677 = vmul.f32 %v1649, %v1674
      %v1678 = vadd.f32 %v1676, %v1677
      %v1679 = vrot.slane %v1678, 4
      %v1680 = vadd.f32 %v1678, %v1679
      %v1681 = vrot.slane %v1680, 2
      %v1682 = vadd.f32 %v1680, %v1681
      %v1683 = vrot.slane %v1682, 1
      %v1684 = vadd.f32 %v1682, %v1683
      %v1685 = vadd.f32 %v1665, %v1684
      %s1686 = sld [smem:[#allocation2]]
      %v1687 = vstv %s1686
      %v1688 = vadd.f32 %v1685, %v1687
      %1689 = vst [vmem:[%s397] sm:$0x1] %v1688
      %p1690 = scmp.lt.s32.totalorder %s23, 1
      %s1691 = scalar_select %p1690, %s23, 1
      %s1692 = scalar_lea.vmem %s11, %s1691
      // Predicated region
      $region65: #{wide_and_deep_forward.1} parent=63 // pred_check
        %p1693 = pneg %p282
      $region66: #{wide_and_deep_forward.1} parent=63 // pred_check_branch
        %1695 = sbr.rel (%p1693) target = $region68
      $region67: #{wide_and_deep_forward.1} parent=63 // pred_region
        _
      $region68: #{wide_and_deep_forward.1} parent=63 // pred_fallthru
        _
    $region64: #{wide_and_deep_forward.1} parent=5 // pred_fallthru
      _
    %p1696 = scmp.le.s32.totalorder 2, %s18
    // Predicated region
    $region69: #{wide_and_deep_forward.1} parent=5 // pred_check
      %p1697 = pneg %p1696
    $region70: #{wide_and_deep_forward.1} parent=5 // pred_check_branch
      %1699 = sbr.rel (%p1697) target = $region72
    $region71: #{wide_and_deep_forward.1} parent=5 // pred_region
      %s1700 = ssub.s32 %s18, 2
      // Predicated region
      $region73: #{wide_and_deep_forward.1} parent=71 // pred_check
        %p1701 = pneg %p288
      $region74: #{wide_and_deep_forward.1} parent=71 // pred_check_branch
        %1703 = sbr.rel (%p1701) target = $region76
      $region75: #{wide_and_deep_forward.1} parent=71 // pred_region
        %p1704 = scmp.lt.s32.totalorder %s24, 1
        %s1705 = scalar_select %p1704, %s24, 1
        %s1706 = scalar_lea.vmem %s11, %s1705
      $region76: #{wide_and_deep_forward.1} parent=71 // pred_fallthru
        _
    $region72: #{wide_and_deep_forward.1} parent=5 // pred_fallthru
      _
  $region6: #{wide_and_deep_forward.1} parent=0 // loop_footer
    %s22 = sadd.s32 1, %s18
  $region7: #{wide_and_deep_forward.1} parent=0 // loop_footer_branch
    %17 = sbr.rel target = $region3
  $region8: #{wide_and_deep_forward.1} parent=0 // loop_exit
    _

</llo_original>
